<compile_context>
chip_gen: v6e
topology: v6e:2x2x1
jax: 0.10.0
libtpu: 0.0.40
codegen_flags: <defaults>
</compile_context>

<pallas_src>
import functools
import math

import jax
import jax.numpy as jnp
import numpy as np
from jax import lax
from jax.experimental import pallas as pl
from jax.experimental.pallas import tpu as pltpu


def _lstm_proj_kernel(x_ref, m_ref, wih_ref, whh_ref, b_ref, wp_ref, bp_ref,
                      out_ref, xg_sc, hall_sc, *, B, T):
    """Full LSTM recurrence + masked projection in one invocation.

    x_ref    : (T*B, D)   time-major flattened inputs
    m_ref    : (T*B, 1)   time-major flattened prefix (non-pad) mask
    wih_ref  : (D, 4H)    W_ih^T
    whh_ref  : (H, 4H)    W_hh^T
    b_ref    : (1, 4H)    b_ih + b_hh
    wp_ref   : (H, D)     W_proj^T
    bp_ref   : (1, D)     b_proj
    out_ref  : (T*B, D)
    xg_sc    : (T*B, 4H)  VMEM scratch: precomputed input->gate contributions
    hall_sc  : (T*B, H)   VMEM scratch: stacked hidden states
    """
    H = whh_ref.shape[0]

    # (1) Input->gate contribution for ALL timesteps in one big MXU pass.
    xg_sc[...] = (jnp.dot(x_ref[...], wih_ref[...],
                          preferred_element_type=jnp.float32)
                  + b_ref[...])

    whh = whh_ref[...]  # hoisted load; reused every step

    # (2) Sequential recurrence; h/c carried in vregs via the fori_loop carry.
    def step(t, carry):
        h, c = carry
        row = pl.multiple_of(t * B, B)
        gates = (xg_sc[pl.ds(row, B), :]
                 + jnp.dot(h, whh, preferred_element_type=jnp.float32))

        i_g = jax.nn.sigmoid(gates[:, 0 * H:1 * H])
        f_g = jax.nn.sigmoid(gates[:, 1 * H:2 * H])
        g_g = jnp.tanh(gates[:, 2 * H:3 * H])
        o_g = jax.nn.sigmoid(gates[:, 3 * H:4 * H])

        c_new = f_g * c + i_g * g_g
        h_new = o_g * jnp.tanh(c_new)
        hall_sc[pl.ds(row, B), :] = h_new
        return (h_new, c_new)

    h0 = jnp.zeros((B, H), jnp.float32)
    c0 = jnp.zeros((B, H), jnp.float32)
    lax.fori_loop(0, T, step, (h0, c0), unroll=True)

    # (3) pad_packed_sequence zeroes padded steps BEFORE the projection, so the
    # projection bias still lands on padded rows: proj(h * mask).  One batched
    # (T*B, H) @ (H, D) matmul + single full-block store.
    masked = hall_sc[...] * m_ref[...]
    out_ref[...] = (jnp.dot(masked, wp_ref[...],
                            preferred_element_type=jnp.float32)
                    + bp_ref[...]).astype(out_ref.dtype)


def rnn_layers_pallas(data, non_pad_mask, params, t_max=None):
    """data: (B, T, d_model) f32, non_pad_mask: (B, T, 1) f32 prefix 0/1 mask.

    Returns (B, T, d_model), or (B, t_max, d_model) if a static t_max is given
    (matching pad_packed_sequence's truncation to max(lengths)).
    """
    w_ih_t, w_hh_t, b_comb, w_p_t, b_p = params
    B, T, D = data.shape
    H = w_hh_t.shape[0]

    # Time-major flatten: row index = t*B + b.
    x_flat = jnp.transpose(data, (1, 0, 2)).reshape(T * B, D)
    m_flat = jnp.transpose(non_pad_mask, (1, 0, 2)).reshape(T * B, 1)

    kernel = functools.partial(_lstm_proj_kernel, B=B, T=T)

    out_flat = pl.pallas_call(
        kernel,
        out_shape=jax.ShapeDtypeStruct((T * B, D), jnp.float32),
        grid_spec=pltpu.PrefetchScalarGridSpec(
            num_scalar_prefetch=0,
            grid=(1,),
            in_specs=[
                pl.BlockSpec((T * B, D), lambda i: (0, 0)),     # x (time-major)
                pl.BlockSpec((T * B, 1), lambda i: (0, 0)),     # mask
                pl.BlockSpec((D, 4 * H), lambda i: (0, 0)),     # W_ih^T
                pl.BlockSpec((H, 4 * H), lambda i: (0, 0)),     # W_hh^T
                pl.BlockSpec((1, 4 * H), lambda i: (0, 0)),     # b_ih + b_hh
                pl.BlockSpec((H, D), lambda i: (0, 0)),         # W_proj^T
                pl.BlockSpec((1, D), lambda i: (0, 0)),         # b_proj
            ],
            out_specs=pl.BlockSpec((T * B, D), lambda i: (0, 0)),
            scratch_shapes=[
                pltpu.VMEM((T * B, 4 * H), jnp.float32),  # precomputed x-gates
                pltpu.VMEM((T * B, H), jnp.float32),      # stacked hidden states
            ],
        ),
        compiler_params=pltpu.CompilerParams(
            dimension_semantics=("arbitrary",)),
    )(x_flat, m_flat, w_ih_t, w_hh_t, b_comb, w_p_t, b_p)

    out = jnp.transpose(out_flat.reshape(T, B, D), (1, 0, 2))   # (B, T, D)
    if t_max is not None:
        out = out[:, :t_max, :]
    return out


def rnn_layers_ref(data, non_pad_mask, params, t_max=None):
    """Pure-JAX reference (lax.scan LSTM) for correctness checking."""
    w_ih_t, w_hh_t, b_comb, w_p_t, b_p = params
    B, T, D = data.shape
    H = w_hh_t.shape[0]

    def step(carry, inp):
        h, c = carry
        xt, mt = inp
        gates = xt @ w_ih_t + h @ w_hh_t + b_comb
        i_g = jax.nn.sigmoid(gates[:, 0 * H:1 * H])
        f_g = jax.nn.sigmoid(gates[:, 1 * H:2 * H])
        g_g = jnp.tanh(gates[:, 2 * H:3 * H])
        o_g = jax.nn.sigmoid(gates[:, 3 * H:4 * H])
        c = f_g * c + i_g * g_g
        h = o_g * jnp.tanh(c)
        out = (h * mt) @ w_p_t + b_p
        return (h, c), out

    x_tbd = jnp.transpose(data, (1, 0, 2))
    m_tb1 = jnp.transpose(non_pad_mask, (1, 0, 2))
    h0 = jnp.zeros((B, H), jnp.float32)
    c0 = jnp.zeros((B, H), jnp.float32)
    _, out_tbd = lax.scan(step, (h0, c0), (x_tbd, m_tb1))
    out = jnp.transpose(out_tbd, (1, 0, 2))
    if t_max is not None:
        out = out[:, :t_max, :]
    return out


def init_params(key, d_model, d_rnn):
    """Deterministic init matching nn.LSTM / nn.Linear parameter shapes."""
    ks = jax.random.split(key, 6)
    bound = 1.0 / math.sqrt(d_rnn)
    w_ih = jax.random.uniform(ks[0], (4 * d_rnn, d_model), jnp.float32, -bound, bound)
    w_hh = jax.random.uniform(ks[1], (4 * d_rnn, d_rnn), jnp.float32, -bound, bound)
    b_ih = jax.random.uniform(ks[2], (4 * d_rnn,), jnp.float32, -bound, bound)
    b_hh = jax.random.uniform(ks[3], (4 * d_rnn,), jnp.float32, -bound, bound)
    w_p = jax.random.uniform(ks[4], (d_model, d_rnn), jnp.float32, -bound, bound)
    b_p = jax.random.uniform(ks[5], (d_model,), jnp.float32, -bound, bound)
    # Kernel-friendly (pre-transposed) layout:
    return (
        jnp.transpose(w_ih),                    # (d_model, 4*d_rnn)
        jnp.transpose(w_hh),                    # (d_rnn,   4*d_rnn)
        (b_ih + b_hh).reshape(1, 4 * d_rnn),    # (1, 4*d_rnn)
        jnp.transpose(w_p),                     # (d_rnn, d_model)
        b_p.reshape(1, d_model),                # (1, d_model)
    )


if __name__ == "__main__":
    B, T, d_model, d_rnn = 8, 8, 32, 32

    key = jax.random.PRNGKey(0)
    k_data, k_param = jax.random.split(key)
    data = jax.random.normal(k_data, (B, T, d_model), jnp.float32)

    # Prefix (non-pad) mask with varying lengths, as pack_padded_sequence expects.
    lengths = np.array([8, 7, 6, 5, 8, 3, 4, 2], dtype=np.int32)
    mask_np = (np.arange(T)[None, :] < lengths[:, None]).astype(np.float32)
    non_pad_mask = jnp.asarray(mask_np)[:, :, None]   # (B, T, 1)

    params = init_params(k_param, d_model, d_rnn)

    # pad_packed_sequence truncates to max(lengths); pass it as a STATIC arg so
    # there is no device->host sync inside the (jittable) wrapper.
    t_max = int(lengths.max())

    fwd = jax.jit(functools.partial(rnn_layers_pallas, t_max=t_max))
    out = jax.block_until_ready(fwd(data, non_pad_mask, params))

    ref = jax.block_until_ready(rnn_layers_ref(data, non_pad_mask, params, t_max=t_max))

    assert out.shape == (B, t_max, d_model), out.shape
    np.testing.assert_allclose(np.asarray(out), np.asarray(ref), atol=1e-5, rtol=1e-5)

    print("KERNEL_OK")
</pallas_src>

<mosaic_0001>
module attributes {stable_mosaic.version = 11 : i64} {
  func.func @_lstm_proj_kernel(%arg0: i32, %arg1: memref<64x32xf32, #tpu.memory_space<vmem>>, %arg2: memref<64x1xf32, #tpu.memory_space<vmem>>, %arg3: memref<32x128xf32, #tpu.memory_space<vmem>>, %arg4: memref<32x128xf32, #tpu.memory_space<vmem>>, %arg5: memref<1x128xf32, #tpu.memory_space<vmem>>, %arg6: memref<32x32xf32, #tpu.memory_space<vmem>>, %arg7: memref<1x32xf32, #tpu.memory_space<vmem>>, %arg8: memref<64x32xf32, #tpu.memory_space<vmem>>, %arg9: memref<64x128xf32, #tpu.memory_space<vmem>>, %arg10: memref<64x32xf32, #tpu.memory_space<vmem>>) attributes {dimension_semantics = [#tpu.dimension_semantics<arbitrary>], iteration_bounds = array<i64: 1>, scalar_prefetch = 0 : i64, scratch_operands = 2 : i64, tpu.core_type = #tpu.core_type<tc>, window_params = [{pipeline_mode = #tpu.pipeline_mode<synchronous>, transform_indices = @transform_0, window_bounds = array<i64: 64, 32>}, {pipeline_mode = #tpu.pipeline_mode<synchronous>, transform_indices = @transform_1, window_bounds = array<i64: 64, 1>}, {pipeline_mode = #tpu.pipeline_mode<synchronous>, transform_indices = @transform_2, window_bounds = array<i64: 32, 128>}, {pipeline_mode = #tpu.pipeline_mode<synchronous>, transform_indices = @transform_3, window_bounds = array<i64: 32, 128>}, {pipeline_mode = #tpu.pipeline_mode<synchronous>, transform_indices = @transform_4, window_bounds = array<i64: 1, 128>}, {pipeline_mode = #tpu.pipeline_mode<synchronous>, transform_indices = @transform_5, window_bounds = array<i64: 32, 32>}, {pipeline_mode = #tpu.pipeline_mode<synchronous>, transform_indices = @transform_6, window_bounds = array<i64: 1, 32>}, {pipeline_mode = #tpu.pipeline_mode<synchronous>, transform_indices = @transform_7, window_bounds = array<i64: 64, 32>}]} {
    %c0 = arith.constant 0 : index
    %c0_0 = arith.constant 0 : index
    %0 = vector.load %arg1[%c0, %c0_0] : memref<64x32xf32, #tpu.memory_space<vmem>>, vector<64x32xf32>
    %c0_1 = arith.constant 0 : index
    %c0_2 = arith.constant 0 : index
    %1 = vector.load %arg3[%c0_1, %c0_2] : memref<32x128xf32, #tpu.memory_space<vmem>>, vector<32x128xf32>
    %cst = arith.constant dense<0.000000e+00> : vector<64x128xf32>
    %2 = tpu.matmul %0, %1, %cst {dimension_numbers = #tpu.dot_dimension_numbers<[1], [0], [0], [1], [0, 0, 1, 1], [], []>} : vector<64x32xf32>, vector<32x128xf32>, vector<64x128xf32> -> vector<64x128xf32>
    %c0_3 = arith.constant 0 : index
    %c0_4 = arith.constant 0 : index
    %3 = vector.load %arg5[%c0_3, %c0_4] : memref<1x128xf32, #tpu.memory_space<vmem>>, vector<1x128xf32>
    %4 = vector.broadcast %3 : vector<1x128xf32> to vector<64x128xf32>
    %5 = arith.addf %2, %4 : vector<64x128xf32>
    %c0_5 = arith.constant 0 : index
    %c0_6 = arith.constant 0 : index
    %6 = vector.load %arg9[%c0_5, %c0_6] : memref<64x128xf32, #tpu.memory_space<vmem>>, vector<64x128xf32>
    tpu.vector_store %arg9[%c0_5, %c0_6], %5 {strides = array<i32>} : memref<64x128xf32, #tpu.memory_space<vmem>>, vector<64x128xf32>,
    %c0_7 = arith.constant 0 : index
    %c0_8 = arith.constant 0 : index
    %7 = vector.load %arg4[%c0_7, %c0_8] : memref<32x128xf32, #tpu.memory_space<vmem>>, vector<32x128xf32>
    %cst_9 = arith.constant 0.000000e+00 : f32
    %8 = vector.broadcast %cst_9 : f32 to vector<8x32xf32>
    %cst_10 = arith.constant 0.000000e+00 : f32
    %9 = vector.broadcast %cst_10 : f32 to vector<8x32xf32>
    %c0_i32 = arith.constant 0 : i32
    %c8_i32 = arith.constant 8 : i32
    %10 = arith.muli %c0_i32, %c8_i32 : i32
    %11 = tpu.assume_multiple %10, 8 : i32
    %12 = arith.index_cast %11 : i32 to index
    %c0_11 = arith.constant 0 : index
    %13 = vector.load %arg9[%12, %c0_11] : memref<64x128xf32, #tpu.memory_space<vmem>>, vector<8x128xf32>
    %cst_12 = arith.constant dense<0.000000e+00> : vector<8x128xf32>
    %14 = tpu.matmul %8, %7, %cst_12 {dimension_numbers = #tpu.dot_dimension_numbers<[1], [0], [0], [1], [0, 0, 1, 1], [], []>} : vector<8x32xf32>, vector<32x128xf32>, vector<8x128xf32> -> vector<8x128xf32>
    %15 = arith.addf %13, %14 : vector<8x128xf32>
    %16 = vector.extract_strided_slice %15 {offsets = [0, 0], sizes = [8, 32], strides = [1, 1]} : vector<8x128xf32> to vector<8x32xf32>
    %17 = arith.negf %16 : vector<8x32xf32>
    %18 = math.exp %17 : vector<8x32xf32>
    %cst_13 = arith.constant 1.000000e+00 : f32
    %19 = vector.broadcast %cst_13 : f32 to vector<8x32xf32>
    %20 = arith.addf %19, %18 : vector<8x32xf32>
    %21 = arith.divf %19, %20 : vector<8x32xf32>
    %22 = vector.extract_strided_slice %15 {offsets = [0, 32], sizes = [8, 32], strides = [1, 1]} : vector<8x128xf32> to vector<8x32xf32>
    %23 = arith.negf %22 : vector<8x32xf32>
    %24 = math.exp %23 : vector<8x32xf32>
    %cst_14 = arith.constant 1.000000e+00 : f32
    %25 = vector.broadcast %cst_14 : f32 to vector<8x32xf32>
    %26 = arith.addf %25, %24 : vector<8x32xf32>
    %27 = arith.divf %25, %26 : vector<8x32xf32>
    %28 = vector.extract_strided_slice %15 {offsets = [0, 64], sizes = [8, 32], strides = [1, 1]} : vector<8x128xf32> to vector<8x32xf32>
    %29 = math.tanh %28 : vector<8x32xf32>
    %30 = vector.extract_strided_slice %15 {offsets = [0, 96], sizes = [8, 32], strides = [1, 1]} : vector<8x128xf32> to vector<8x32xf32>
    %31 = arith.negf %30 : vector<8x32xf32>
    %32 = math.exp %31 : vector<8x32xf32>
    %cst_15 = arith.constant 1.000000e+00 : f32
    %33 = vector.broadcast %cst_15 : f32 to vector<8x32xf32>
    %34 = arith.addf %33, %32 : vector<8x32xf32>
    %35 = arith.divf %33, %34 : vector<8x32xf32>
    %36 = arith.mulf %27, %9 : vector<8x32xf32>
    %37 = arith.mulf %21, %29 : vector<8x32xf32>
    %38 = arith.addf %36, %37 : vector<8x32xf32>
    %39 = math.tanh %38 : vector<8x32xf32>
    %40 = arith.mulf %35, %39 : vector<8x32xf32>
    %41 = arith.index_cast %11 : i32 to index
    %c0_16 = arith.constant 0 : index
    %42 = vector.load %arg10[%41, %c0_16] : memref<64x32xf32, #tpu.memory_space<vmem>>, vector<8x32xf32>
    tpu.vector_store %arg10[%41, %c0_16], %40 {strides = array<i32>} : memref<64x32xf32, #tpu.memory_space<vmem>>, vector<8x32xf32>,
    %c1_i32 = arith.constant 1 : i32
    %c8_i32_17 = arith.constant 8 : i32
    %43 = arith.muli %c1_i32, %c8_i32_17 : i32
    %44 = tpu.assume_multiple %43, 8 : i32
    %45 = arith.index_cast %44 : i32 to index
    %c0_18 = arith.constant 0 : index
    %46 = vector.load %arg9[%45, %c0_18] : memref<64x128xf32, #tpu.memory_space<vmem>>, vector<8x128xf32>
    %cst_19 = arith.constant dense<0.000000e+00> : vector<8x128xf32>
    %47 = tpu.matmul %40, %7, %cst_19 {dimension_numbers = #tpu.dot_dimension_numbers<[1], [0], [0], [1], [0, 0, 1, 1], [], []>} : vector<8x32xf32>, vector<32x128xf32>, vector<8x128xf32> -> vector<8x128xf32>
    %48 = arith.addf %46, %47 : vector<8x128xf32>
    %49 = vector.extract_strided_slice %48 {offsets = [0, 0], sizes = [8, 32], strides = [1, 1]} : vector<8x128xf32> to vector<8x32xf32>
    %50 = arith.negf %49 : vector<8x32xf32>
    %51 = math.exp %50 : vector<8x32xf32>
    %cst_20 = arith.constant 1.000000e+00 : f32
    %52 = vector.broadcast %cst_20 : f32 to vector<8x32xf32>
    %53 = arith.addf %52, %51 : vector<8x32xf32>
    %54 = arith.divf %52, %53 : vector<8x32xf32>
    %55 = vector.extract_strided_slice %48 {offsets = [0, 32], sizes = [8, 32], strides = [1, 1]} : vector<8x128xf32> to vector<8x32xf32>
    %56 = arith.negf %55 : vector<8x32xf32>
    %57 = math.exp %56 : vector<8x32xf32>
    %cst_21 = arith.constant 1.000000e+00 : f32
    %58 = vector.broadcast %cst_21 : f32 to vector<8x32xf32>
    %59 = arith.addf %58, %57 : vector<8x32xf32>
    %60 = arith.divf %58, %59 : vector<8x32xf32>
    %61 = vector.extract_strided_slice %48 {offsets = [0, 64], sizes = [8, 32], strides = [1, 1]} : vector<8x128xf32> to vector<8x32xf32>
    %62 = math.tanh %61 : vector<8x32xf32>
    %63 = vector.extract_strided_slice %48 {offsets = [0, 96], sizes = [8, 32], strides = [1, 1]} : vector<8x128xf32> to vector<8x32xf32>
    %64 = arith.negf %63 : vector<8x32xf32>
    %65 = math.exp %64 : vector<8x32xf32>
    %cst_22 = arith.constant 1.000000e+00 : f32
    %66 = vector.broadcast %cst_22 : f32 to vector<8x32xf32>
    %67 = arith.addf %66, %65 : vector<8x32xf32>
    %68 = arith.divf %66, %67 : vector<8x32xf32>
    %69 = arith.mulf %60, %38 : vector<8x32xf32>
    %70 = arith.mulf %54, %62 : vector<8x32xf32>
    %71 = arith.addf %69, %70 : vector<8x32xf32>
    %72 = math.tanh %71 : vector<8x32xf32>
    %73 = arith.mulf %68, %72 : vector<8x32xf32>
    %74 = arith.index_cast %44 : i32 to index
    %c0_23 = arith.constant 0 : index
    %75 = vector.load %arg10[%74, %c0_23] : memref<64x32xf32, #tpu.memory_space<vmem>>, vector<8x32xf32>
    tpu.vector_store %arg10[%74, %c0_23], %73 {strides = array<i32>} : memref<64x32xf32, #tpu.memory_space<vmem>>, vector<8x32xf32>,
    %c2_i32 = arith.constant 2 : i32
    %c8_i32_24 = arith.constant 8 : i32
    %76 = arith.muli %c2_i32, %c8_i32_24 : i32
    %77 = tpu.assume_multiple %76, 8 : i32
    %78 = arith.index_cast %77 : i32 to index
    %c0_25 = arith.constant 0 : index
    %79 = vector.load %arg9[%78, %c0_25] : memref<64x128xf32, #tpu.memory_space<vmem>>, vector<8x128xf32>
    %cst_26 = arith.constant dense<0.000000e+00> : vector<8x128xf32>
    %80 = tpu.matmul %73, %7, %cst_26 {dimension_numbers = #tpu.dot_dimension_numbers<[1], [0], [0], [1], [0, 0, 1, 1], [], []>} : vector<8x32xf32>, vector<32x128xf32>, vector<8x128xf32> -> vector<8x128xf32>
    %81 = arith.addf %79, %80 : vector<8x128xf32>
    %82 = vector.extract_strided_slice %81 {offsets = [0, 0], sizes = [8, 32], strides = [1, 1]} : vector<8x128xf32> to vector<8x32xf32>
    %83 = arith.negf %82 : vector<8x32xf32>
    %84 = math.exp %83 : vector<8x32xf32>
    %cst_27 = arith.constant 1.000000e+00 : f32
    %85 = vector.broadcast %cst_27 : f32 to vector<8x32xf32>
    %86 = arith.addf %85, %84 : vector<8x32xf32>
    %87 = arith.divf %85, %86 : vector<8x32xf32>
    %88 = vector.extract_strided_slice %81 {offsets = [0, 32], sizes = [8, 32], strides = [1, 1]} : vector<8x128xf32> to vector<8x32xf32>
    %89 = arith.negf %88 : vector<8x32xf32>
    %90 = math.exp %89 : vector<8x32xf32>
    %cst_28 = arith.constant 1.000000e+00 : f32
    %91 = vector.broadcast %cst_28 : f32 to vector<8x32xf32>
    %92 = arith.addf %91, %90 : vector<8x32xf32>
    %93 = arith.divf %91, %92 : vector<8x32xf32>
    %94 = vector.extract_strided_slice %81 {offsets = [0, 64], sizes = [8, 32], strides = [1, 1]} : vector<8x128xf32> to vector<8x32xf32>
    %95 = math.tanh %94 : vector<8x32xf32>
    %96 = vector.extract_strided_slice %81 {offsets = [0, 96], sizes = [8, 32], strides = [1, 1]} : vector<8x128xf32> to vector<8x32xf32>
    %97 = arith.negf %96 : vector<8x32xf32>
    %98 = math.exp %97 : vector<8x32xf32>
    %cst_29 = arith.constant 1.000000e+00 : f32
    %99 = vector.broadcast %cst_29 : f32 to vector<8x32xf32>
    %100 = arith.addf %99, %98 : vector<8x32xf32>
    %101 = arith.divf %99, %100 : vector<8x32xf32>
    %102 = arith.mulf %93, %71 : vector<8x32xf32>
    %103 = arith.mulf %87, %95 : vector<8x32xf32>
    %104 = arith.addf %102, %103 : vector<8x32xf32>
    %105 = math.tanh %104 : vector<8x32xf32>
    %106 = arith.mulf %101, %105 : vector<8x32xf32>
    %107 = arith.index_cast %77 : i32 to index
    %c0_30 = arith.constant 0 : index
    %108 = vector.load %arg10[%107, %c0_30] : memref<64x32xf32, #tpu.memory_space<vmem>>, vector<8x32xf32>
    tpu.vector_store %arg10[%107, %c0_30], %106 {strides = array<i32>} : memref<64x32xf32, #tpu.memory_space<vmem>>, vector<8x32xf32>,
    %c3_i32 = arith.constant 3 : i32
    %c8_i32_31 = arith.constant 8 : i32
    %109 = arith.muli %c3_i32, %c8_i32_31 : i32
    %110 = tpu.assume_multiple %109, 8 : i32
    %111 = arith.index_cast %110 : i32 to index
    %c0_32 = arith.constant 0 : index
    %112 = vector.load %arg9[%111, %c0_32] : memref<64x128xf32, #tpu.memory_space<vmem>>, vector<8x128xf32>
    %cst_33 = arith.constant dense<0.000000e+00> : vector<8x128xf32>
    %113 = tpu.matmul %106, %7, %cst_33 {dimension_numbers = #tpu.dot_dimension_numbers<[1], [0], [0], [1], [0, 0, 1, 1], [], []>} : vector<8x32xf32>, vector<32x128xf32>, vector<8x128xf32> -> vector<8x128xf32>
    %114 = arith.addf %112, %113 : vector<8x128xf32>
    %115 = vector.extract_strided_slice %114 {offsets = [0, 0], sizes = [8, 32], strides = [1, 1]} : vector<8x128xf32> to vector<8x32xf32>
    %116 = arith.negf %115 : vector<8x32xf32>
    %117 = math.exp %116 : vector<8x32xf32>
    %cst_34 = arith.constant 1.000000e+00 : f32
    %118 = vector.broadcast %cst_34 : f32 to vector<8x32xf32>
    %119 = arith.addf %118, %117 : vector<8x32xf32>
    %120 = arith.divf %118, %119 : vector<8x32xf32>
    %121 = vector.extract_strided_slice %114 {offsets = [0, 32], sizes = [8, 32], strides = [1, 1]} : vector<8x128xf32> to vector<8x32xf32>
    %122 = arith.negf %121 : vector<8x32xf32>
    %123 = math.exp %122 : vector<8x32xf32>
    %cst_35 = arith.constant 1.000000e+00 : f32
    %124 = vector.broadcast %cst_35 : f32 to vector<8x32xf32>
    %125 = arith.addf %124, %123 : vector<8x32xf32>
    %126 = arith.divf %124, %125 : vector<8x32xf32>
    %127 = vector.extract_strided_slice %114 {offsets = [0, 64], sizes = [8, 32], strides = [1, 1]} : vector<8x128xf32> to vector<8x32xf32>
    %128 = math.tanh %127 : vector<8x32xf32>
    %129 = vector.extract_strided_slice %114 {offsets = [0, 96], sizes = [8, 32], strides = [1, 1]} : vector<8x128xf32> to vector<8x32xf32>
    %130 = arith.negf %129 : vector<8x32xf32>
    %131 = math.exp %130 : vector<8x32xf32>
    %cst_36 = arith.constant 1.000000e+00 : f32
    %132 = vector.broadcast %cst_36 : f32 to vector<8x32xf32>
    %133 = arith.addf %132, %131 : vector<8x32xf32>
    %134 = arith.divf %132, %133 : vector<8x32xf32>
    %135 = arith.mulf %126, %104 : vector<8x32xf32>
    %136 = arith.mulf %120, %128 : vector<8x32xf32>
    %137 = arith.addf %135, %136 : vector<8x32xf32>
    %138 = math.tanh %137 : vector<8x32xf32>
    %139 = arith.mulf %134, %138 : vector<8x32xf32>
    %140 = arith.index_cast %110 : i32 to index
    %c0_37 = arith.constant 0 : index
    %141 = vector.load %arg10[%140, %c0_37] : memref<64x32xf32, #tpu.memory_space<vmem>>, vector<8x32xf32>
    tpu.vector_store %arg10[%140, %c0_37], %139 {strides = array<i32>} : memref<64x32xf32, #tpu.memory_space<vmem>>, vector<8x32xf32>,
    %c4_i32 = arith.constant 4 : i32
    %c8_i32_38 = arith.constant 8 : i32
    %142 = arith.muli %c4_i32, %c8_i32_38 : i32
    %143 = tpu.assume_multiple %142, 8 : i32
    %144 = arith.index_cast %143 : i32 to index
    %c0_39 = arith.constant 0 : index
    %145 = vector.load %arg9[%144, %c0_39] : memref<64x128xf32, #tpu.memory_space<vmem>>, vector<8x128xf32>
    %cst_40 = arith.constant dense<0.000000e+00> : vector<8x128xf32>
    %146 = tpu.matmul %139, %7, %cst_40 {dimension_numbers = #tpu.dot_dimension_numbers<[1], [0], [0], [1], [0, 0, 1, 1], [], []>} : vector<8x32xf32>, vector<32x128xf32>, vector<8x128xf32> -> vector<8x128xf32>
    %147 = arith.addf %145, %146 : vector<8x128xf32>
    %148 = vector.extract_strided_slice %147 {offsets = [0, 0], sizes = [8, 32], strides = [1, 1]} : vector<8x128xf32> to vector<8x32xf32>
    %149 = arith.negf %148 : vector<8x32xf32>
    %150 = math.exp %149 : vector<8x32xf32>
    %cst_41 = arith.constant 1.000000e+00 : f32
    %151 = vector.broadcast %cst_41 : f32 to vector<8x32xf32>
    %152 = arith.addf %151, %150 : vector<8x32xf32>
    %153 = arith.divf %151, %152 : vector<8x32xf32>
    %154 = vector.extract_strided_slice %147 {offsets = [0, 32], sizes = [8, 32], strides = [1, 1]} : vector<8x128xf32> to vector<8x32xf32>
    %155 = arith.negf %154 : vector<8x32xf32>
    %156 = math.exp %155 : vector<8x32xf32>
    %cst_42 = arith.constant 1.000000e+00 : f32
    %157 = vector.broadcast %cst_42 : f32 to vector<8x32xf32>
    %158 = arith.addf %157, %156 : vector<8x32xf32>
    %159 = arith.divf %157, %158 : vector<8x32xf32>
    %160 = vector.extract_strided_slice %147 {offsets = [0, 64], sizes = [8, 32], strides = [1, 1]} : vector<8x128xf32> to vector<8x32xf32>
    %161 = math.tanh %160 : vector<8x32xf32>
    %162 = vector.extract_strided_slice %147 {offsets = [0, 96], sizes = [8, 32], strides = [1, 1]} : vector<8x128xf32> to vector<8x32xf32>
    %163 = arith.negf %162 : vector<8x32xf32>
    %164 = math.exp %163 : vector<8x32xf32>
    %cst_43 = arith.constant 1.000000e+00 : f32
    %165 = vector.broadcast %cst_43 : f32 to vector<8x32xf32>
    %166 = arith.addf %165, %164 : vector<8x32xf32>
    %167 = arith.divf %165, %166 : vector<8x32xf32>
    %168 = arith.mulf %159, %137 : vector<8x32xf32>
    %169 = arith.mulf %153, %161 : vector<8x32xf32>
    %170 = arith.addf %168, %169 : vector<8x32xf32>
    %171 = math.tanh %170 : vector<8x32xf32>
    %172 = arith.mulf %167, %171 : vector<8x32xf32>
    %173 = arith.index_cast %143 : i32 to index
    %c0_44 = arith.constant 0 : index
    %174 = vector.load %arg10[%173, %c0_44] : memref<64x32xf32, #tpu.memory_space<vmem>>, vector<8x32xf32>
    tpu.vector_store %arg10[%173, %c0_44], %172 {strides = array<i32>} : memref<64x32xf32, #tpu.memory_space<vmem>>, vector<8x32xf32>,
    %c5_i32 = arith.constant 5 : i32
    %c8_i32_45 = arith.constant 8 : i32
    %175 = arith.muli %c5_i32, %c8_i32_45 : i32
    %176 = tpu.assume_multiple %175, 8 : i32
    %177 = arith.index_cast %176 : i32 to index
    %c0_46 = arith.constant 0 : index
    %178 = vector.load %arg9[%177, %c0_46] : memref<64x128xf32, #tpu.memory_space<vmem>>, vector<8x128xf32>
    %cst_47 = arith.constant dense<0.000000e+00> : vector<8x128xf32>
    %179 = tpu.matmul %172, %7, %cst_47 {dimension_numbers = #tpu.dot_dimension_numbers<[1], [0], [0], [1], [0, 0, 1, 1], [], []>} : vector<8x32xf32>, vector<32x128xf32>, vector<8x128xf32> -> vector<8x128xf32>
    %180 = arith.addf %178, %179 : vector<8x128xf32>
    %181 = vector.extract_strided_slice %180 {offsets = [0, 0], sizes = [8, 32], strides = [1, 1]} : vector<8x128xf32> to vector<8x32xf32>
    %182 = arith.negf %181 : vector<8x32xf32>
    %183 = math.exp %182 : vector<8x32xf32>
    %cst_48 = arith.constant 1.000000e+00 : f32
    %184 = vector.broadcast %cst_48 : f32 to vector<8x32xf32>
    %185 = arith.addf %184, %183 : vector<8x32xf32>
    %186 = arith.divf %184, %185 : vector<8x32xf32>
    %187 = vector.extract_strided_slice %180 {offsets = [0, 32], sizes = [8, 32], strides = [1, 1]} : vector<8x128xf32> to vector<8x32xf32>
    %188 = arith.negf %187 : vector<8x32xf32>
    %189 = math.exp %188 : vector<8x32xf32>
    %cst_49 = arith.constant 1.000000e+00 : f32
    %190 = vector.broadcast %cst_49 : f32 to vector<8x32xf32>
    %191 = arith.addf %190, %189 : vector<8x32xf32>
    %192 = arith.divf %190, %191 : vector<8x32xf32>
    %193 = vector.extract_strided_slice %180 {offsets = [0, 64], sizes = [8, 32], strides = [1, 1]} : vector<8x128xf32> to vector<8x32xf32>
    %194 = math.tanh %193 : vector<8x32xf32>
    %195 = vector.extract_strided_slice %180 {offsets = [0, 96], sizes = [8, 32], strides = [1, 1]} : vector<8x128xf32> to vector<8x32xf32>
    %196 = arith.negf %195 : vector<8x32xf32>
    %197 = math.exp %196 : vector<8x32xf32>
    %cst_50 = arith.constant 1.000000e+00 : f32
    %198 = vector.broadcast %cst_50 : f32 to vector<8x32xf32>
    %199 = arith.addf %198, %197 : vector<8x32xf32>
    %200 = arith.divf %198, %199 : vector<8x32xf32>
    %201 = arith.mulf %192, %170 : vector<8x32xf32>
    %202 = arith.mulf %186, %194 : vector<8x32xf32>
    %203 = arith.addf %201, %202 : vector<8x32xf32>
    %204 = math.tanh %203 : vector<8x32xf32>
    %205 = arith.mulf %200, %204 : vector<8x32xf32>
    %206 = arith.index_cast %176 : i32 to index
    %c0_51 = arith.constant 0 : index
    %207 = vector.load %arg10[%206, %c0_51] : memref<64x32xf32, #tpu.memory_space<vmem>>, vector<8x32xf32>
    tpu.vector_store %arg10[%206, %c0_51], %205 {strides = array<i32>} : memref<64x32xf32, #tpu.memory_space<vmem>>, vector<8x32xf32>,
    %c6_i32 = arith.constant 6 : i32
    %c8_i32_52 = arith.constant 8 : i32
    %208 = arith.muli %c6_i32, %c8_i32_52 : i32
    %209 = tpu.assume_multiple %208, 8 : i32
    %210 = arith.index_cast %209 : i32 to index
    %c0_53 = arith.constant 0 : index
    %211 = vector.load %arg9[%210, %c0_53] : memref<64x128xf32, #tpu.memory_space<vmem>>, vector<8x128xf32>
    %cst_54 = arith.constant dense<0.000000e+00> : vector<8x128xf32>
    %212 = tpu.matmul %205, %7, %cst_54 {dimension_numbers = #tpu.dot_dimension_numbers<[1], [0], [0], [1], [0, 0, 1, 1], [], []>} : vector<8x32xf32>, vector<32x128xf32>, vector<8x128xf32> -> vector<8x128xf32>
    %213 = arith.addf %211, %212 : vector<8x128xf32>
    %214 = vector.extract_strided_slice %213 {offsets = [0, 0], sizes = [8, 32], strides = [1, 1]} : vector<8x128xf32> to vector<8x32xf32>
    %215 = arith.negf %214 : vector<8x32xf32>
    %216 = math.exp %215 : vector<8x32xf32>
    %cst_55 = arith.constant 1.000000e+00 : f32
    %217 = vector.broadcast %cst_55 : f32 to vector<8x32xf32>
    %218 = arith.addf %217, %216 : vector<8x32xf32>
    %219 = arith.divf %217, %218 : vector<8x32xf32>
    %220 = vector.extract_strided_slice %213 {offsets = [0, 32], sizes = [8, 32], strides = [1, 1]} : vector<8x128xf32> to vector<8x32xf32>
    %221 = arith.negf %220 : vector<8x32xf32>
    %222 = math.exp %221 : vector<8x32xf32>
    %cst_56 = arith.constant 1.000000e+00 : f32
    %223 = vector.broadcast %cst_56 : f32 to vector<8x32xf32>
    %224 = arith.addf %223, %222 : vector<8x32xf32>
    %225 = arith.divf %223, %224 : vector<8x32xf32>
    %226 = vector.extract_strided_slice %213 {offsets = [0, 64], sizes = [8, 32], strides = [1, 1]} : vector<8x128xf32> to vector<8x32xf32>
    %227 = math.tanh %226 : vector<8x32xf32>
    %228 = vector.extract_strided_slice %213 {offsets = [0, 96], sizes = [8, 32], strides = [1, 1]} : vector<8x128xf32> to vector<8x32xf32>
    %229 = arith.negf %228 : vector<8x32xf32>
    %230 = math.exp %229 : vector<8x32xf32>
    %cst_57 = arith.constant 1.000000e+00 : f32
    %231 = vector.broadcast %cst_57 : f32 to vector<8x32xf32>
    %232 = arith.addf %231, %230 : vector<8x32xf32>
    %233 = arith.divf %231, %232 : vector<8x32xf32>
    %234 = arith.mulf %225, %203 : vector<8x32xf32>
    %235 = arith.mulf %219, %227 : vector<8x32xf32>
    %236 = arith.addf %234, %235 : vector<8x32xf32>
    %237 = math.tanh %236 : vector<8x32xf32>
    %238 = arith.mulf %233, %237 : vector<8x32xf32>
    %239 = arith.index_cast %209 : i32 to index
    %c0_58 = arith.constant 0 : index
    %240 = vector.load %arg10[%239, %c0_58] : memref<64x32xf32, #tpu.memory_space<vmem>>, vector<8x32xf32>
    tpu.vector_store %arg10[%239, %c0_58], %238 {strides = array<i32>} : memref<64x32xf32, #tpu.memory_space<vmem>>, vector<8x32xf32>,
    %c7_i32 = arith.constant 7 : i32
    %c8_i32_59 = arith.constant 8 : i32
    %241 = arith.muli %c7_i32, %c8_i32_59 : i32
    %242 = tpu.assume_multiple %241, 8 : i32
    %243 = arith.index_cast %242 : i32 to index
    %c0_60 = arith.constant 0 : index
    %244 = vector.load %arg9[%243, %c0_60] : memref<64x128xf32, #tpu.memory_space<vmem>>, vector<8x128xf32>
    %cst_61 = arith.constant dense<0.000000e+00> : vector<8x128xf32>
    %245 = tpu.matmul %238, %7, %cst_61 {dimension_numbers = #tpu.dot_dimension_numbers<[1], [0], [0], [1], [0, 0, 1, 1], [], []>} : vector<8x32xf32>, vector<32x128xf32>, vector<8x128xf32> -> vector<8x128xf32>
    %246 = arith.addf %244, %245 : vector<8x128xf32>
    %247 = vector.extract_strided_slice %246 {offsets = [0, 0], sizes = [8, 32], strides = [1, 1]} : vector<8x128xf32> to vector<8x32xf32>
    %248 = arith.negf %247 : vector<8x32xf32>
    %249 = math.exp %248 : vector<8x32xf32>
    %cst_62 = arith.constant 1.000000e+00 : f32
    %250 = vector.broadcast %cst_62 : f32 to vector<8x32xf32>
    %251 = arith.addf %250, %249 : vector<8x32xf32>
    %252 = arith.divf %250, %251 : vector<8x32xf32>
    %253 = vector.extract_strided_slice %246 {offsets = [0, 32], sizes = [8, 32], strides = [1, 1]} : vector<8x128xf32> to vector<8x32xf32>
    %254 = arith.negf %253 : vector<8x32xf32>
    %255 = math.exp %254 : vector<8x32xf32>
    %cst_63 = arith.constant 1.000000e+00 : f32
    %256 = vector.broadcast %cst_63 : f32 to vector<8x32xf32>
    %257 = arith.addf %256, %255 : vector<8x32xf32>
    %258 = arith.divf %256, %257 : vector<8x32xf32>
    %259 = vector.extract_strided_slice %246 {offsets = [0, 64], sizes = [8, 32], strides = [1, 1]} : vector<8x128xf32> to vector<8x32xf32>
    %260 = math.tanh %259 : vector<8x32xf32>
    %261 = vector.extract_strided_slice %246 {offsets = [0, 96], sizes = [8, 32], strides = [1, 1]} : vector<8x128xf32> to vector<8x32xf32>
    %262 = arith.negf %261 : vector<8x32xf32>
    %263 = math.exp %262 : vector<8x32xf32>
    %cst_64 = arith.constant 1.000000e+00 : f32
    %264 = vector.broadcast %cst_64 : f32 to vector<8x32xf32>
    %265 = arith.addf %264, %263 : vector<8x32xf32>
    %266 = arith.divf %264, %265 : vector<8x32xf32>
    %267 = arith.mulf %258, %236 : vector<8x32xf32>
    %268 = arith.mulf %252, %260 : vector<8x32xf32>
    %269 = arith.addf %267, %268 : vector<8x32xf32>
    %270 = math.tanh %269 : vector<8x32xf32>
    %271 = arith.mulf %266, %270 : vector<8x32xf32>
    %272 = arith.index_cast %242 : i32 to index
    %c0_65 = arith.constant 0 : index
    %273 = vector.load %arg10[%272, %c0_65] : memref<64x32xf32, #tpu.memory_space<vmem>>, vector<8x32xf32>
    tpu.vector_store %arg10[%272, %c0_65], %271 {strides = array<i32>} : memref<64x32xf32, #tpu.memory_space<vmem>>, vector<8x32xf32>,
    %c8_i32_66 = arith.constant 8 : i32
    %c0_67 = arith.constant 0 : index
    %c0_68 = arith.constant 0 : index
    %274 = vector.load %arg10[%c0_67, %c0_68] : memref<64x32xf32, #tpu.memory_space<vmem>>, vector<64x32xf32>
    %c0_69 = arith.constant 0 : index
    %c0_70 = arith.constant 0 : index
    %275 = vector.load %arg2[%c0_69, %c0_70] : memref<64x1xf32, #tpu.memory_space<vmem>>, vector<64x1xf32>
    %276 = vector.broadcast %275 : vector<64x1xf32> to vector<64x32xf32>
    %277 = arith.mulf %274, %276 : vector<64x32xf32>
    %c0_71 = arith.constant 0 : index
    %c0_72 = arith.constant 0 : index
    %278 = vector.load %arg6[%c0_71, %c0_72] : memref<32x32xf32, #tpu.memory_space<vmem>>, vector<32x32xf32>
    %cst_73 = arith.constant dense<0.000000e+00> : vector<64x32xf32>
    %279 = tpu.matmul %277, %278, %cst_73 {dimension_numbers = #tpu.dot_dimension_numbers<[1], [0], [0], [1], [0, 0, 1, 1], [], []>} : vector<64x32xf32>, vector<32x32xf32>, vector<64x32xf32> -> vector<64x32xf32>
    %c0_74 = arith.constant 0 : index
    %c0_75 = arith.constant 0 : index
    %280 = vector.load %arg7[%c0_74, %c0_75] : memref<1x32xf32, #tpu.memory_space<vmem>>, vector<1x32xf32>
    %281 = vector.broadcast %280 : vector<1x32xf32> to vector<64x32xf32>
    %282 = arith.addf %279, %281 : vector<64x32xf32>
    %c0_76 = arith.constant 0 : index
    %c0_77 = arith.constant 0 : index
    %283 = vector.load %arg8[%c0_76, %c0_77] : memref<64x32xf32, #tpu.memory_space<vmem>>, vector<64x32xf32>
    tpu.vector_store %arg8[%c0_76, %c0_77], %282 {strides = array<i32>} : memref<64x32xf32, #tpu.memory_space<vmem>>, vector<64x32xf32>,
    return
  }
  func.func @transform_0(%arg0: i32) -> (i32, i32) {
    %c0_i32 = arith.constant 0 : i32
    %c0_i32_0 = arith.constant 0 : i32
    %c0_i32_1 = arith.constant 0 : i32
    return %c0_i32, %c0_i32_0 : i32, i32
  }
  func.func @transform_1(%arg0: i32) -> (i32, i32) {
    %c0_i32 = arith.constant 0 : i32
    %c0_i32_0 = arith.constant 0 : i32
    %c0_i32_1 = arith.constant 0 : i32
    return %c0_i32, %c0_i32_0 : i32, i32
  }
  func.func @transform_2(%arg0: i32) -> (i32, i32) {
    %c0_i32 = arith.constant 0 : i32
    %c0_i32_0 = arith.constant 0 : i32
    %c0_i32_1 = arith.constant 0 : i32
    return %c0_i32, %c0_i32_0 : i32, i32
  }
  func.func @transform_3(%arg0: i32) -> (i32, i32) {
    %c0_i32 = arith.constant 0 : i32
    %c0_i32_0 = arith.constant 0 : i32
    %c0_i32_1 = arith.constant 0 : i32
    return %c0_i32, %c0_i32_0 : i32, i32
  }
  func.func @transform_4(%arg0: i32) -> (i32, i32) {
    %c0_i32 = arith.constant 0 : i32
    %c0_i32_0 = arith.constant 0 : i32
    %c0_i32_1 = arith.constant 0 : i32
    return %c0_i32, %c0_i32_0 : i32, i32
  }
  func.func @transform_5(%arg0: i32) -> (i32, i32) {
    %c0_i32 = arith.constant 0 : i32
    %c0_i32_0 = arith.constant 0 : i32
    %c0_i32_1 = arith.constant 0 : i32
    return %c0_i32, %c0_i32_0 : i32, i32
  }
  func.func @transform_6(%arg0: i32) -> (i32, i32) {
    %c0_i32 = arith.constant 0 : i32
    %c0_i32_0 = arith.constant 0 : i32
    %c0_i32_1 = arith.constant 0 : i32
    return %c0_i32, %c0_i32_0 : i32, i32
  }
  func.func @transform_7(%arg0: i32) -> (i32, i32) {
    %c0_i32 = arith.constant 0 : i32
    %c0_i32_0 = arith.constant 0 : i32
    %c0_i32_1 = arith.constant 0 : i32
    return %c0_i32, %c0_i32_0 : i32, i32
  }
}

</mosaic_0001>

<llo_original>
// kernel: rnn_layers_pallas.1
$region0: #{rnn_layers_pallas.1}
  #allocation0 [shape = 'u32[]', space=smem, size = 0x4, offset = 0x4, fixed_abs, tag = 'smem constant byte address 0x4 - core index']
  #allocation1 [shape = 'u32[144,128]{1,0:T(1,128)}', space=vmem, size = 0x12000, scoped, tag = 'internal scratch']
  #allocation2 [shape = 'f32[64,128]{1,0:T(8,128)}', space=vmem, size = 0x8000, scoped, tag = 'scratch operand']
  #allocation3 [shape = 'f32[64,32]{1,0:T(8,128)}', space=vmem, size = 0x8000, scoped, tag = 'scratch operand']
  %s0 = inlined_call_operand.vmem [shape: f32[64,32], index: 0, kind: input, shape index: {}]
  %s1 = inlined_call_operand.vmem [shape: f32[64,1], index: 1, kind: input, shape index: {}]
  %s2 = inlined_call_operand.vmem [shape: f32[32,128], index: 2, kind: input, shape index: {}]
  %s3 = inlined_call_operand.vmem [shape: f32[32,128], index: 3, kind: input, shape index: {}]
  %s4 = inlined_call_operand.vmem [shape: f32[1,128], index: 4, kind: input, shape index: {}]
  %s5 = inlined_call_operand.vmem [shape: f32[32,32], index: 5, kind: input, shape index: {}]
  %s6 = inlined_call_operand.vmem [shape: f32[1,32], index: 6, kind: input, shape index: {}]
  %s7 = inlined_call_operand.vmem [shape: f32[64,32], index: 7, kind: output, shape index: {}]
  %s8 = sld [smem:[#allocation0]]
  $region38: #{rnn_layers_pallas.1} parent=0
    _
  %s10 = ssub.s32 1, %s8
  %s11 = scalar_select 0, %s10, %s8
  // Predicated region
  $region2: #{rnn_layers_pallas.1} parent=0 // pred_check
    _
  $region3: #{rnn_layers_pallas.1} parent=0 // pred_check_branch
    %13 = sbr.rel (0) target = $region5
  $region4: #{rnn_layers_pallas.1} parent=0 // pred_region
    _
  $region5: #{rnn_layers_pallas.1} parent=0 // pred_fallthru
    _
  // Predicated region
  $region6: #{rnn_layers_pallas.1} parent=0 // pred_check
    _
  $region7: #{rnn_layers_pallas.1} parent=0 // pred_check_branch
    %15 = sbr.rel (0) target = $region9
  $region8: #{rnn_layers_pallas.1} parent=0 // pred_region
    _
  $region9: #{rnn_layers_pallas.1} parent=0 // pred_fallthru
    _
  // Predicated region
  $region10: #{rnn_layers_pallas.1} parent=0 // pred_check
    _
  $region11: #{rnn_layers_pallas.1} parent=0 // pred_check_branch
    %17 = sbr.rel (0) target = $region13
  $region12: #{rnn_layers_pallas.1} parent=0 // pred_region
    _
  $region13: #{rnn_layers_pallas.1} parent=0 // pred_fallthru
    _
  // Predicated region
  $region14: #{rnn_layers_pallas.1} parent=0 // pred_check
    _
  $region15: #{rnn_layers_pallas.1} parent=0 // pred_check_branch
    %19 = sbr.rel (0) target = $region17
  $region16: #{rnn_layers_pallas.1} parent=0 // pred_region
    _
  $region17: #{rnn_layers_pallas.1} parent=0 // pred_fallthru
    _
  // Predicated region
  $region18: #{rnn_layers_pallas.1} parent=0 // pred_check
    _
  $region19: #{rnn_layers_pallas.1} parent=0 // pred_check_branch
    %21 = sbr.rel (0) target = $region21
  $region20: #{rnn_layers_pallas.1} parent=0 // pred_region
    _
  $region21: #{rnn_layers_pallas.1} parent=0 // pred_fallthru
    _
  // Predicated region
  $region22: #{rnn_layers_pallas.1} parent=0 // pred_check
    _
  $region23: #{rnn_layers_pallas.1} parent=0 // pred_check_branch
    %23 = sbr.rel (0) target = $region25
  $region24: #{rnn_layers_pallas.1} parent=0 // pred_region
    _
  $region25: #{rnn_layers_pallas.1} parent=0 // pred_fallthru
    _
  // Predicated region
  $region26: #{rnn_layers_pallas.1} parent=0 // pred_check
    _
  $region27: #{rnn_layers_pallas.1} parent=0 // pred_check_branch
    %25 = sbr.rel (0) target = $region29
  $region28: #{rnn_layers_pallas.1} parent=0 // pred_region
    _
  $region29: #{rnn_layers_pallas.1} parent=0 // pred_fallthru
    _
  %v26 = vld [vmem:[%s0] sm:$0xff]
  %v27 = vld [vmem:[%s0 + $0x8] sm:$0xff]
  %v28 = vld [vmem:[%s0 + $0x10] sm:$0xff]
  %v29 = vld [vmem:[%s0 + $0x18] sm:$0xff]
  %v30 = vld [vmem:[%s0 + $0x20] sm:$0xff]
  %v31 = vld [vmem:[%s0 + $0x28] sm:$0xff]
  %v32 = vld [vmem:[%s0 + $0x30] sm:$0xff]
  %v33 = vld [vmem:[%s0 + $0x38] sm:$0xff]
  %v34 = vld [vmem:[%s2] sm:$0xff]
  %v35 = vld [vmem:[%s2 + $0x8] sm:$0xff]
  %v36 = vld [vmem:[%s2 + $0x10] sm:$0xff]
  %v37 = vld [vmem:[%s2 + $0x18] sm:$0xff]
  %v38 = vld [vmem:[%s4] sm:$0x1]
  %v40 = vlaneseq
  %v41 = vshrl.u32 %v40, 7
  %v42 = vsub.s32 0, %v41
  %v43 = vrot.slane %v38, %v42
  %vm45 = vcmask 261120
  %v47 = vsel %vm45, %v26, 0
  %v50 = vsel %vm45, %v27, 0
  %v53 = vsel %vm45, %v28, 0
  %v56 = vsel %vm45, %v29, 0
  %v59 = vsel %vm45, %v30, 0
  %v62 = vsel %vm45, %v31, 0
  %v65 = vsel %vm45, %v32, 0
  %v68 = vsel %vm45, %v33, 0
  %70 = vmatprep.subr.mxu0 0.0
  %71 = vmatpush1.msra.mxu0 0.0
  %72 = vmatprep.subr.mxu0 0.0
  %73 = vmatpush1.msra.mxu0 0.0
  %74 = vmatprep.subr.mxu0 0.0
  %75 = vmatpush1.msra.mxu0 0.0
  %76 = vmatprep.subr.mxu0 0.0
  %77 = vmatpush1.msra.mxu0 0.0
  %78 = vmatprep.subr.mxu0 0.0
  %79 = vmatpush1.msra.mxu0 0.0
  %80 = vmatprep.subr.mxu0 0.0
  %81 = vmatpush1.msra.mxu0 0.0
  %82 = vmatprep.subr.mxu0 0.0
  %83 = vmatpush1.msra.mxu0 0.0
  %84 = vmatprep.subr.mxu0 0.0
  %85 = vmatpush1.msra.mxu0 0.0
  %86 = vmatprep.subr.mxu0 0.0
  %87 = vmatpush1.msra.mxu0 0.0
  %88 = vmatprep.subr.mxu0 0.0
  %89 = vmatpush1.msra.mxu0 0.0
  %90 = vmatprep.subr.mxu0 0.0
  %91 = vmatpush1.msra.mxu0 0.0
  %92 = vmatprep.subr.mxu0 0.0
  %93 = vmatpush1.msra.mxu0 0.0
  %94 = vmatprep.subr.mxu0 0.0
  %95 = vmatpush1.msra.mxu0 %v37
  %96 = vmatprep.subr.mxu0 0.0
  %97 = vmatpush1.msra.mxu0 %v36
  %98 = vmatprep.subr.mxu0 0.0
  %99 = vmatpush1.msra.mxu0 %v35
  %100 = vmatprep.subr.mxu0 0.0
  %101 = vmatpush1.msra.mxu0 %v34
  %102 = vmatprep.subr.mxu0 0.0
  %103 = vmatpush2.msra.mxu0 0.0
  %104 = vmatprep.subr.mxu0 0.0
  %105 = vmatpush2.msra.mxu0 0.0
  %106 = vmatprep.subr.mxu0 0.0
  %107 = vmatpush2.msra.mxu0 0.0
  %108 = vmatprep.subr.mxu0 0.0
  %109 = vmatpush2.msra.mxu0 0.0
  %110 = vmatprep.subr.mxu0 0.0
  %111 = vmatpush2.msra.mxu0 0.0
  %112 = vmatprep.subr.mxu0 0.0
  %113 = vmatpush2.msra.mxu0 0.0
  %114 = vmatprep.subr.mxu0 0.0
  %115 = vmatpush2.msra.mxu0 0.0
  %116 = vmatprep.subr.mxu0 0.0
  %117 = vmatpush2.msra.mxu0 0.0
  %118 = vmatprep.subr.mxu0 0.0
  %119 = vmatpush2.msra.mxu0 0.0
  %120 = vmatprep.subr.mxu0 0.0
  %121 = vmatpush2.msra.mxu0 0.0
  %122 = vmatprep.subr.mxu0 0.0
  %123 = vmatpush2.msra.mxu0 0.0
  %124 = vmatprep.subr.mxu0 0.0
  %125 = vmatpush2.msra.mxu0 0.0
  %126 = vmatprep.subr.mxu0 0.0
  %127 = vmatpush2.msra.mxu0 0.0
  %128 = vmatprep.subr.mxu0 0.0
  %129 = vmatpush2.msra.mxu0 0.0
  %130 = vmatprep.subr.mxu0 0.0
  %131 = vmatpush2.msra.mxu0 0.0
  %132 = vmatprep.subr.mxu0 0.0
  %133 = vmatpush2.msra.mxu0 0.0
  %134 = vmatprep.mubr.f32.mxu0 0.0
  %135 = vmatmul.mubr.f32.gmra.mxu0 %v47
  %v136 = vpop.f32.mrf.mxu0
  %v137 = vadd.f32 %v43, %v136
  %v138 = vpop.f32.mrf.mxu0
  %139 = vmatprep.mubr.f32.mxu0 0.0
  %140 = vmatmul.mubr.f32.gmra.mxu0 %v50
  %v141 = vpop.f32.mrf.mxu0
  %v142 = vadd.f32 %v43, %v141
  %v143 = vpop.f32.mrf.mxu0
  %144 = vmatprep.mubr.f32.mxu0 0.0
  %145 = vmatmul.mubr.f32.gmra.mxu0 %v53
  %v146 = vpop.f32.mrf.mxu0
  %v147 = vadd.f32 %v43, %v146
  %v148 = vpop.f32.mrf.mxu0
  %149 = vmatprep.mubr.f32.mxu0 0.0
  %150 = vmatmul.mubr.f32.gmra.mxu0 %v56
  %v151 = vpop.f32.mrf.mxu0
  %v152 = vadd.f32 %v43, %v151
  %v153 = vpop.f32.mrf.mxu0
  %154 = vmatprep.mubr.f32.mxu0 0.0
  %155 = vmatmul.mubr.f32.gmra.mxu0 %v59
  %v156 = vpop.f32.mrf.mxu0
  %v157 = vadd.f32 %v43, %v156
  %v158 = vpop.f32.mrf.mxu0
  %159 = vmatprep.mubr.f32.mxu0 0.0
  %160 = vmatmul.mubr.f32.gmra.mxu0 %v62
  %v161 = vpop.f32.mrf.mxu0
  %v162 = vadd.f32 %v43, %v161
  %v163 = vpop.f32.mrf.mxu0
  %164 = vmatprep.mubr.f32.mxu0 0.0
  %165 = vmatmul.mubr.f32.gmra.mxu0 %v65
  %v166 = vpop.f32.mrf.mxu0
  %v167 = vadd.f32 %v43, %v166
  %v168 = vpop.f32.mrf.mxu0
  %169 = vmatprep.mubr.f32.mxu0 0.0
  %170 = vmatmul.mubr.f32.gmra.mxu0 %v68
  %v171 = vpop.f32.mrf.mxu0
  %v172 = vadd.f32 %v43, %v171
  %v173 = vpop.f32.mrf.mxu0
  %174 = vdwg.mxu0
  %175 = vst [vmem:[#allocation2] sm:$0xff] %v137
  %176 = vst [vmem:[#allocation2 + $0x8] sm:$0xff] %v142
  %177 = vst [vmem:[#allocation2 + $0x10] sm:$0xff] %v147
  %178 = vst [vmem:[#allocation2 + $0x18] sm:$0xff] %v152
  %179 = vst [vmem:[#allocation2 + $0x20] sm:$0xff] %v157
  %180 = vst [vmem:[#allocation2 + $0x28] sm:$0xff] %v162
  %181 = vst [vmem:[#allocation2 + $0x30] sm:$0xff] %v167
  %182 = vst [vmem:[#allocation2 + $0x38] sm:$0xff] %v172
  %v183 = vld [vmem:[%s3] sm:$0xff]
  %v184 = vld [vmem:[%s3 + $0x8] sm:$0xff]
  %v185 = vld [vmem:[%s3 + $0x10] sm:$0xff]
  %v186 = vld [vmem:[%s3 + $0x18] sm:$0xff]
  %v187 = vld [vmem:[#allocation2] sm:$0xff]
  %v189 = vsel %vm45, 0.0, 0
  %191 = vmatprep.subr.mxu0 0.0
  %192 = vmatpush1.msra.mxu0 0.0
  %193 = vmatprep.subr.mxu0 0.0
  %194 = vmatpush1.msra.mxu0 0.0
  %195 = vmatprep.subr.mxu0 0.0
  %196 = vmatpush1.msra.mxu0 0.0
  %197 = vmatprep.subr.mxu0 0.0
  %198 = vmatpush1.msra.mxu0 0.0
  %199 = vmatprep.subr.mxu0 0.0
  %200 = vmatpush1.msra.mxu0 0.0
  %201 = vmatprep.subr.mxu0 0.0
  %202 = vmatpush1.msra.mxu0 0.0
  %203 = vmatprep.subr.mxu0 0.0
  %204 = vmatpush1.msra.mxu0 0.0
  %205 = vmatprep.subr.mxu0 0.0
  %206 = vmatpush1.msra.mxu0 0.0
  %207 = vmatprep.subr.mxu0 0.0
  %208 = vmatpush1.msra.mxu0 0.0
  %209 = vmatprep.subr.mxu0 0.0
  %210 = vmatpush1.msra.mxu0 0.0
  %211 = vmatprep.subr.mxu0 0.0
  %212 = vmatpush1.msra.mxu0 0.0
  %213 = vmatprep.subr.mxu0 0.0
  %214 = vmatpush1.msra.mxu0 0.0
  %215 = vmatprep.subr.mxu0 0.0
  %216 = vmatpush1.msra.mxu0 %v186
  %217 = vmatprep.subr.mxu0 0.0
  %218 = vmatpush1.msra.mxu0 %v185
  %219 = vmatprep.subr.mxu0 0.0
  %220 = vmatpush1.msra.mxu0 %v184
  %221 = vmatprep.subr.mxu0 0.0
  %222 = vmatpush1.msra.mxu0 %v183
  %223 = vmatprep.subr.mxu0 0.0
  %224 = vmatpush2.msra.mxu0 0.0
  %225 = vmatprep.subr.mxu0 0.0
  %226 = vmatpush2.msra.mxu0 0.0
  %227 = vmatprep.subr.mxu0 0.0
  %228 = vmatpush2.msra.mxu0 0.0
  %229 = vmatprep.subr.mxu0 0.0
  %230 = vmatpush2.msra.mxu0 0.0
  %231 = vmatprep.subr.mxu0 0.0
  %232 = vmatpush2.msra.mxu0 0.0
  %233 = vmatprep.subr.mxu0 0.0
  %234 = vmatpush2.msra.mxu0 0.0
  %235 = vmatprep.subr.mxu0 0.0
  %236 = vmatpush2.msra.mxu0 0.0
  %237 = vmatprep.subr.mxu0 0.0
  %238 = vmatpush2.msra.mxu0 0.0
  %239 = vmatprep.subr.mxu0 0.0
  %240 = vmatpush2.msra.mxu0 0.0
  %241 = vmatprep.subr.mxu0 0.0
  %242 = vmatpush2.msra.mxu0 0.0
  %243 = vmatprep.subr.mxu0 0.0
  %244 = vmatpush2.msra.mxu0 0.0
  %245 = vmatprep.subr.mxu0 0.0
  %246 = vmatpush2.msra.mxu0 0.0
  %247 = vmatprep.subr.mxu0 0.0
  %248 = vmatpush2.msra.mxu0 0.0
  %249 = vmatprep.subr.mxu0 0.0
  %250 = vmatpush2.msra.mxu0 0.0
  %251 = vmatprep.subr.mxu0 0.0
  %252 = vmatpush2.msra.mxu0 0.0
  %253 = vmatprep.subr.mxu0 0.0
  %254 = vmatpush2.msra.mxu0 0.0
  %255 = vmatprep.mubr.f32.mxu0 0.0
  %256 = vmatmul.mubr.f32.gmra.mxu0 %v189
  %v257 = vpop.f32.mrf.mxu0
  %v258 = vadd.f32 0.0, %v257
  %v259 = vpop.f32.mrf.mxu0
  %260 = vdwg.mxu0
  %v261 = vadd.f32 %v187, %v258
  %v262 = vxor.u32 %v261, 2147483648
  %v263 = vmul.f32 %v262, 1.442695
  %v264 = vpow.pop %v263
  %v265 = vadd.f32 %v264, 1.0
  %v266 = vrcp.pop %v265
  %v267 = vmul.f32 1.0, %v266
  %v268 = vtanh.pop %v261
  %v269 = vmul.f32 %v267, 0.0
  %271 = vrot.lane.b32.xlu0 %v268, 64
  %v272 = vpop.permute.xlu0 %271
  %v274 = vmul.f32 %v267, %v272
  %276 = vrot.lane.b32.xlu0 %v274, 32
  %v277 = vpop.permute.xlu0 %276
  %v279 = vadd.f32 %v269, %v277
  %v280 = vtanh.pop %v279
  %282 = vrot.lane.b32.xlu0 %v280, 64
  %v283 = vpop.permute.xlu0 %282
  %v285 = vmul.f32 %v267, %v283
  %287 = vrot.lane.b32.xlu0 %v285, 32
  %v288 = vpop.permute.xlu0 %287
  %290 = vst.msk [vmem:[#allocation3] sm:$0xff] %vm45, %v288
  %s291 = scalar_lea.vmem [#allocation2], 8
  %v292 = vld [vmem:[%s291] sm:$0xff]
  %v293 = vsel %vm45, %v288, 0
  %295 = vmatprep.subr.mxu0 0.0
  %296 = vmatpush1.msra.mxu0 0.0
  %297 = vmatprep.subr.mxu0 0.0
  %298 = vmatpush1.msra.mxu0 0.0
  %299 = vmatprep.subr.mxu0 0.0
  %300 = vmatpush1.msra.mxu0 0.0
  %301 = vmatprep.subr.mxu0 0.0
  %302 = vmatpush1.msra.mxu0 0.0
  %303 = vmatprep.subr.mxu0 0.0
  %304 = vmatpush1.msra.mxu0 0.0
  %305 = vmatprep.subr.mxu0 0.0
  %306 = vmatpush1.msra.mxu0 0.0
  %307 = vmatprep.subr.mxu0 0.0
  %308 = vmatpush1.msra.mxu0 0.0
  %309 = vmatprep.subr.mxu0 0.0
  %310 = vmatpush1.msra.mxu0 0.0
  %311 = vmatprep.subr.mxu0 0.0
  %312 = vmatpush1.msra.mxu0 0.0
  %313 = vmatprep.subr.mxu0 0.0
  %314 = vmatpush1.msra.mxu0 0.0
  %315 = vmatprep.subr.mxu0 0.0
  %316 = vmatpush1.msra.mxu0 0.0
  %317 = vmatprep.subr.mxu0 0.0
  %318 = vmatpush1.msra.mxu0 0.0
  %319 = vmatprep.subr.mxu0 0.0
  %320 = vmatpush1.msra.mxu0 %v186
  %321 = vmatprep.subr.mxu0 0.0
  %322 = vmatpush1.msra.mxu0 %v185
  %323 = vmatprep.subr.mxu0 0.0
  %324 = vmatpush1.msra.mxu0 %v184
  %325 = vmatprep.subr.mxu0 0.0
  %326 = vmatpush1.msra.mxu0 %v183
  %327 = vmatprep.subr.mxu0 0.0
  %328 = vmatpush2.msra.mxu0 0.0
  %329 = vmatprep.subr.mxu0 0.0
  %330 = vmatpush2.msra.mxu0 0.0
  %331 = vmatprep.subr.mxu0 0.0
  %332 = vmatpush2.msra.mxu0 0.0
  %333 = vmatprep.subr.mxu0 0.0
  %334 = vmatpush2.msra.mxu0 0.0
  %335 = vmatprep.subr.mxu0 0.0
  %336 = vmatpush2.msra.mxu0 0.0
  %337 = vmatprep.subr.mxu0 0.0
  %338 = vmatpush2.msra.mxu0 0.0
  %339 = vmatprep.subr.mxu0 0.0
  %340 = vmatpush2.msra.mxu0 0.0
  %341 = vmatprep.subr.mxu0 0.0
  %342 = vmatpush2.msra.mxu0 0.0
  %343 = vmatprep.subr.mxu0 0.0
  %344 = vmatpush2.msra.mxu0 0.0
  %345 = vmatprep.subr.mxu0 0.0
  %346 = vmatpush2.msra.mxu0 0.0
  %347 = vmatprep.subr.mxu0 0.0
  %348 = vmatpush2.msra.mxu0 0.0
  %349 = vmatprep.subr.mxu0 0.0
  %350 = vmatpush2.msra.mxu0 0.0
  %351 = vmatprep.subr.mxu0 0.0
  %352 = vmatpush2.msra.mxu0 0.0
  %353 = vmatprep.subr.mxu0 0.0
  %354 = vmatpush2.msra.mxu0 0.0
  %355 = vmatprep.subr.mxu0 0.0
  %356 = vmatpush2.msra.mxu0 0.0
  %357 = vmatprep.subr.mxu0 0.0
  %358 = vmatpush2.msra.mxu0 0.0
  %359 = vmatprep.mubr.f32.mxu0 0.0
  %360 = vmatmul.mubr.f32.gmra.mxu0 %v293
  %v361 = vpop.f32.mrf.mxu0
  %v362 = vadd.f32 0.0, %v361
  %v363 = vpop.f32.mrf.mxu0
  %364 = vdwg.mxu0
  %v365 = vadd.f32 %v292, %v362
  %v366 = vxor.u32 %v365, 2147483648
  %v367 = vmul.f32 %v366, 1.442695
  %v368 = vpow.pop %v367
  %v369 = vadd.f32 %v368, 1.0
  %v370 = vrcp.pop %v369
  %v371 = vmul.f32 1.0, %v370
  %v372 = vtanh.pop %v365
  %v373 = vmul.f32 %v371, %v279
  %375 = vrot.lane.b32.xlu0 %v372, 64
  %v376 = vpop.permute.xlu0 %375
  %v378 = vmul.f32 %v371, %v376
  %380 = vrot.lane.b32.xlu0 %v378, 32
  %v381 = vpop.permute.xlu0 %380
  %v383 = vadd.f32 %v373, %v381
  %v384 = vtanh.pop %v383
  %386 = vrot.lane.b32.xlu0 %v384, 64
  %v387 = vpop.permute.xlu0 %386
  %v389 = vmul.f32 %v371, %v387
  %391 = vrot.lane.b32.xlu0 %v389, 32
  %v392 = vpop.permute.xlu0 %391
  %s394 = scalar_lea.vmem [#allocation3], 8
  %395 = vst.msk [vmem:[%s394] sm:$0xff] %vm45, %v392
  %s396 = scalar_lea.vmem [#allocation2], 16
  %v397 = vld [vmem:[%s396] sm:$0xff]
  %v398 = vsel %vm45, %v392, 0
  %400 = vmatprep.subr.mxu0 0.0
  %401 = vmatpush1.msra.mxu0 0.0
  %402 = vmatprep.subr.mxu0 0.0
  %403 = vmatpush1.msra.mxu0 0.0
  %404 = vmatprep.subr.mxu0 0.0
  %405 = vmatpush1.msra.mxu0 0.0
  %406 = vmatprep.subr.mxu0 0.0
  %407 = vmatpush1.msra.mxu0 0.0
  %408 = vmatprep.subr.mxu0 0.0
  %409 = vmatpush1.msra.mxu0 0.0
  %410 = vmatprep.subr.mxu0 0.0
  %411 = vmatpush1.msra.mxu0 0.0
  %412 = vmatprep.subr.mxu0 0.0
  %413 = vmatpush1.msra.mxu0 0.0
  %414 = vmatprep.subr.mxu0 0.0
  %415 = vmatpush1.msra.mxu0 0.0
  %416 = vmatprep.subr.mxu0 0.0
  %417 = vmatpush1.msra.mxu0 0.0
  %418 = vmatprep.subr.mxu0 0.0
  %419 = vmatpush1.msra.mxu0 0.0
  %420 = vmatprep.subr.mxu0 0.0
  %421 = vmatpush1.msra.mxu0 0.0
  %422 = vmatprep.subr.mxu0 0.0
  %423 = vmatpush1.msra.mxu0 0.0
  %424 = vmatprep.subr.mxu0 0.0
  %425 = vmatpush1.msra.mxu0 %v186
  %426 = vmatprep.subr.mxu0 0.0
  %427 = vmatpush1.msra.mxu0 %v185
  %428 = vmatprep.subr.mxu0 0.0
  %429 = vmatpush1.msra.mxu0 %v184
  %430 = vmatprep.subr.mxu0 0.0
  %431 = vmatpush1.msra.mxu0 %v183
  %432 = vmatprep.subr.mxu0 0.0
  %433 = vmatpush2.msra.mxu0 0.0
  %434 = vmatprep.subr.mxu0 0.0
  %435 = vmatpush2.msra.mxu0 0.0
  %436 = vmatprep.subr.mxu0 0.0
  %437 = vmatpush2.msra.mxu0 0.0
  %438 = vmatprep.subr.mxu0 0.0
  %439 = vmatpush2.msra.mxu0 0.0
  %440 = vmatprep.subr.mxu0 0.0
  %441 = vmatpush2.msra.mxu0 0.0
  %442 = vmatprep.subr.mxu0 0.0
  %443 = vmatpush2.msra.mxu0 0.0
  %444 = vmatprep.subr.mxu0 0.0
  %445 = vmatpush2.msra.mxu0 0.0
  %446 = vmatprep.subr.mxu0 0.0
  %447 = vmatpush2.msra.mxu0 0.0
  %448 = vmatprep.subr.mxu0 0.0
  %449 = vmatpush2.msra.mxu0 0.0
  %450 = vmatprep.subr.mxu0 0.0
  %451 = vmatpush2.msra.mxu0 0.0
  %452 = vmatprep.subr.mxu0 0.0
  %453 = vmatpush2.msra.mxu0 0.0
  %454 = vmatprep.subr.mxu0 0.0
  %455 = vmatpush2.msra.mxu0 0.0
  %456 = vmatprep.subr.mxu0 0.0
  %457 = vmatpush2.msra.mxu0 0.0
  %458 = vmatprep.subr.mxu0 0.0
  %459 = vmatpush2.msra.mxu0 0.0
  %460 = vmatprep.subr.mxu0 0.0
  %461 = vmatpush2.msra.mxu0 0.0
  %462 = vmatprep.subr.mxu0 0.0
  %463 = vmatpush2.msra.mxu0 0.0
  %464 = vmatprep.mubr.f32.mxu0 0.0
  %465 = vmatmul.mubr.f32.gmra.mxu0 %v398
  %v466 = vpop.f32.mrf.mxu0
  %v467 = vadd.f32 0.0, %v466
  %v468 = vpop.f32.mrf.mxu0
  %469 = vdwg.mxu0
  %v470 = vadd.f32 %v397, %v467
  %v471 = vxor.u32 %v470, 2147483648
  %v472 = vmul.f32 %v471, 1.442695
  %v473 = vpow.pop %v472
  %v474 = vadd.f32 %v473, 1.0
  %v475 = vrcp.pop %v474
  %v476 = vmul.f32 1.0, %v475
  %v477 = vtanh.pop %v470
  %v478 = vmul.f32 %v476, %v383
  %480 = vrot.lane.b32.xlu0 %v477, 64
  %v481 = vpop.permute.xlu0 %480
  %v483 = vmul.f32 %v476, %v481
  %485 = vrot.lane.b32.xlu0 %v483, 32
  %v486 = vpop.permute.xlu0 %485
  %v488 = vadd.f32 %v478, %v486
  %v489 = vtanh.pop %v488
  %491 = vrot.lane.b32.xlu0 %v489, 64
  %v492 = vpop.permute.xlu0 %491
  %v494 = vmul.f32 %v476, %v492
  %496 = vrot.lane.b32.xlu0 %v494, 32
  %v497 = vpop.permute.xlu0 %496
  %s499 = scalar_lea.vmem [#allocation3], 16
  %500 = vst.msk [vmem:[%s499] sm:$0xff] %vm45, %v497
  %s501 = scalar_lea.vmem [#allocation2], 24
  %v502 = vld [vmem:[%s501] sm:$0xff]
  %v503 = vsel %vm45, %v497, 0
  %505 = vmatprep.subr.mxu0 0.0
  %506 = vmatpush1.msra.mxu0 0.0
  %507 = vmatprep.subr.mxu0 0.0
  %508 = vmatpush1.msra.mxu0 0.0
  %509 = vmatprep.subr.mxu0 0.0
  %510 = vmatpush1.msra.mxu0 0.0
  %511 = vmatprep.subr.mxu0 0.0
  %512 = vmatpush1.msra.mxu0 0.0
  %513 = vmatprep.subr.mxu0 0.0
  %514 = vmatpush1.msra.mxu0 0.0
  %515 = vmatprep.subr.mxu0 0.0
  %516 = vmatpush1.msra.mxu0 0.0
  %517 = vmatprep.subr.mxu0 0.0
  %518 = vmatpush1.msra.mxu0 0.0
  %519 = vmatprep.subr.mxu0 0.0
  %520 = vmatpush1.msra.mxu0 0.0
  %521 = vmatprep.subr.mxu0 0.0
  %522 = vmatpush1.msra.mxu0 0.0
  %523 = vmatprep.subr.mxu0 0.0
  %524 = vmatpush1.msra.mxu0 0.0
  %525 = vmatprep.subr.mxu0 0.0
  %526 = vmatpush1.msra.mxu0 0.0
  %527 = vmatprep.subr.mxu0 0.0
  %528 = vmatpush1.msra.mxu0 0.0
  %529 = vmatprep.subr.mxu0 0.0
  %530 = vmatpush1.msra.mxu0 %v186
  %531 = vmatprep.subr.mxu0 0.0
  %532 = vmatpush1.msra.mxu0 %v185
  %533 = vmatprep.subr.mxu0 0.0
  %534 = vmatpush1.msra.mxu0 %v184
  %535 = vmatprep.subr.mxu0 0.0
  %536 = vmatpush1.msra.mxu0 %v183
  %537 = vmatprep.subr.mxu0 0.0
  %538 = vmatpush2.msra.mxu0 0.0
  %539 = vmatprep.subr.mxu0 0.0
  %540 = vmatpush2.msra.mxu0 0.0
  %541 = vmatprep.subr.mxu0 0.0
  %542 = vmatpush2.msra.mxu0 0.0
  %543 = vmatprep.subr.mxu0 0.0
  %544 = vmatpush2.msra.mxu0 0.0
  %545 = vmatprep.subr.mxu0 0.0
  %546 = vmatpush2.msra.mxu0 0.0
  %547 = vmatprep.subr.mxu0 0.0
  %548 = vmatpush2.msra.mxu0 0.0
  %549 = vmatprep.subr.mxu0 0.0
  %550 = vmatpush2.msra.mxu0 0.0
  %551 = vmatprep.subr.mxu0 0.0
  %552 = vmatpush2.msra.mxu0 0.0
  %553 = vmatprep.subr.mxu0 0.0
  %554 = vmatpush2.msra.mxu0 0.0
  %555 = vmatprep.subr.mxu0 0.0
  %556 = vmatpush2.msra.mxu0 0.0
  %557 = vmatprep.subr.mxu0 0.0
  %558 = vmatpush2.msra.mxu0 0.0
  %559 = vmatprep.subr.mxu0 0.0
  %560 = vmatpush2.msra.mxu0 0.0
  %561 = vmatprep.subr.mxu0 0.0
  %562 = vmatpush2.msra.mxu0 0.0
  %563 = vmatprep.subr.mxu0 0.0
  %564 = vmatpush2.msra.mxu0 0.0
  %565 = vmatprep.subr.mxu0 0.0
  %566 = vmatpush2.msra.mxu0 0.0
  %567 = vmatprep.subr.mxu0 0.0
  %568 = vmatpush2.msra.mxu0 0.0
  %569 = vmatprep.mubr.f32.mxu0 0.0
  %570 = vmatmul.mubr.f32.gmra.mxu0 %v503
  %v571 = vpop.f32.mrf.mxu0
  %v572 = vadd.f32 0.0, %v571
  %v573 = vpop.f32.mrf.mxu0
  %574 = vdwg.mxu0
  %v575 = vadd.f32 %v502, %v572
  %v576 = vxor.u32 %v575, 2147483648
  %v577 = vmul.f32 %v576, 1.442695
  %v578 = vpow.pop %v577
  %v579 = vadd.f32 %v578, 1.0
  %v580 = vrcp.pop %v579
  %v581 = vmul.f32 1.0, %v580
  %v582 = vtanh.pop %v575
  %v583 = vmul.f32 %v581, %v488
  %585 = vrot.lane.b32.xlu0 %v582, 64
  %v586 = vpop.permute.xlu0 %585
  %v588 = vmul.f32 %v581, %v586
  %590 = vrot.lane.b32.xlu0 %v588, 32
  %v591 = vpop.permute.xlu0 %590
  %v593 = vadd.f32 %v583, %v591
  %v594 = vtanh.pop %v593
  %596 = vrot.lane.b32.xlu0 %v594, 64
  %v597 = vpop.permute.xlu0 %596
  %v599 = vmul.f32 %v581, %v597
  %601 = vrot.lane.b32.xlu0 %v599, 32
  %v602 = vpop.permute.xlu0 %601
  %s604 = scalar_lea.vmem [#allocation3], 24
  %605 = vst.msk [vmem:[%s604] sm:$0xff] %vm45, %v602
  %s606 = scalar_lea.vmem [#allocation2], 32
  %v607 = vld [vmem:[%s606] sm:$0xff]
  %v608 = vsel %vm45, %v602, 0
  %610 = vmatprep.subr.mxu0 0.0
  %611 = vmatpush1.msra.mxu0 0.0
  %612 = vmatprep.subr.mxu0 0.0
  %613 = vmatpush1.msra.mxu0 0.0
  %614 = vmatprep.subr.mxu0 0.0
  %615 = vmatpush1.msra.mxu0 0.0
  %616 = vmatprep.subr.mxu0 0.0
  %617 = vmatpush1.msra.mxu0 0.0
  %618 = vmatprep.subr.mxu0 0.0
  %619 = vmatpush1.msra.mxu0 0.0
  %620 = vmatprep.subr.mxu0 0.0
  %621 = vmatpush1.msra.mxu0 0.0
  %622 = vmatprep.subr.mxu0 0.0
  %623 = vmatpush1.msra.mxu0 0.0
  %624 = vmatprep.subr.mxu0 0.0
  %625 = vmatpush1.msra.mxu0 0.0
  %626 = vmatprep.subr.mxu0 0.0
  %627 = vmatpush1.msra.mxu0 0.0
  %628 = vmatprep.subr.mxu0 0.0
  %629 = vmatpush1.msra.mxu0 0.0
  %630 = vmatprep.subr.mxu0 0.0
  %631 = vmatpush1.msra.mxu0 0.0
  %632 = vmatprep.subr.mxu0 0.0
  %633 = vmatpush1.msra.mxu0 0.0
  %634 = vmatprep.subr.mxu0 0.0
  %635 = vmatpush1.msra.mxu0 %v186
  %636 = vmatprep.subr.mxu0 0.0
  %637 = vmatpush1.msra.mxu0 %v185
  %638 = vmatprep.subr.mxu0 0.0
  %639 = vmatpush1.msra.mxu0 %v184
  %640 = vmatprep.subr.mxu0 0.0
  %641 = vmatpush1.msra.mxu0 %v183
  %642 = vmatprep.subr.mxu0 0.0
  %643 = vmatpush2.msra.mxu0 0.0
  %644 = vmatprep.subr.mxu0 0.0
  %645 = vmatpush2.msra.mxu0 0.0
  %646 = vmatprep.subr.mxu0 0.0
  %647 = vmatpush2.msra.mxu0 0.0
  %648 = vmatprep.subr.mxu0 0.0
  %649 = vmatpush2.msra.mxu0 0.0
  %650 = vmatprep.subr.mxu0 0.0
  %651 = vmatpush2.msra.mxu0 0.0
  %652 = vmatprep.subr.mxu0 0.0
  %653 = vmatpush2.msra.mxu0 0.0
  %654 = vmatprep.subr.mxu0 0.0
  %655 = vmatpush2.msra.mxu0 0.0
  %656 = vmatprep.subr.mxu0 0.0
  %657 = vmatpush2.msra.mxu0 0.0
  %658 = vmatprep.subr.mxu0 0.0
  %659 = vmatpush2.msra.mxu0 0.0
  %660 = vmatprep.subr.mxu0 0.0
  %661 = vmatpush2.msra.mxu0 0.0
  %662 = vmatprep.subr.mxu0 0.0
  %663 = vmatpush2.msra.mxu0 0.0
  %664 = vmatprep.subr.mxu0 0.0
  %665 = vmatpush2.msra.mxu0 0.0
  %666 = vmatprep.subr.mxu0 0.0
  %667 = vmatpush2.msra.mxu0 0.0
  %668 = vmatprep.subr.mxu0 0.0
  %669 = vmatpush2.msra.mxu0 0.0
  %670 = vmatprep.subr.mxu0 0.0
  %671 = vmatpush2.msra.mxu0 0.0
  %672 = vmatprep.subr.mxu0 0.0
  %673 = vmatpush2.msra.mxu0 0.0
  %674 = vmatprep.mubr.f32.mxu0 0.0
  %675 = vmatmul.mubr.f32.gmra.mxu0 %v608
  %v676 = vpop.f32.mrf.mxu0
  %v677 = vadd.f32 0.0, %v676
  %v678 = vpop.f32.mrf.mxu0
  %679 = vdwg.mxu0
  %v680 = vadd.f32 %v607, %v677
  %v681 = vxor.u32 %v680, 2147483648
  %v682 = vmul.f32 %v681, 1.442695
  %v683 = vpow.pop %v682
  %v684 = vadd.f32 %v683, 1.0
  %v685 = vrcp.pop %v684
  %v686 = vmul.f32 1.0, %v685
  %v687 = vtanh.pop %v680
  %v688 = vmul.f32 %v686, %v593
  %690 = vrot.lane.b32.xlu0 %v687, 64
  %v691 = vpop.permute.xlu0 %690
  %v693 = vmul.f32 %v686, %v691
  %695 = vrot.lane.b32.xlu0 %v693, 32
  %v696 = vpop.permute.xlu0 %695
  %v698 = vadd.f32 %v688, %v696
  %v699 = vtanh.pop %v698
  %701 = vrot.lane.b32.xlu0 %v699, 64
  %v702 = vpop.permute.xlu0 %701
  %v704 = vmul.f32 %v686, %v702
  %706 = vrot.lane.b32.xlu0 %v704, 32
  %v707 = vpop.permute.xlu0 %706
  %s709 = scalar_lea.vmem [#allocation3], 32
  %710 = vst.msk [vmem:[%s709] sm:$0xff] %vm45, %v707
  %s711 = scalar_lea.vmem [#allocation2], 40
  %v712 = vld [vmem:[%s711] sm:$0xff]
  %v713 = vsel %vm45, %v707, 0
  %715 = vmatprep.subr.mxu0 0.0
  %716 = vmatpush1.msra.mxu0 0.0
  %717 = vmatprep.subr.mxu0 0.0
  %718 = vmatpush1.msra.mxu0 0.0
  %719 = vmatprep.subr.mxu0 0.0
  %720 = vmatpush1.msra.mxu0 0.0
  %721 = vmatprep.subr.mxu0 0.0
  %722 = vmatpush1.msra.mxu0 0.0
  %723 = vmatprep.subr.mxu0 0.0
  %724 = vmatpush1.msra.mxu0 0.0
  %725 = vmatprep.subr.mxu0 0.0
  %726 = vmatpush1.msra.mxu0 0.0
  %727 = vmatprep.subr.mxu0 0.0
  %728 = vmatpush1.msra.mxu0 0.0
  %729 = vmatprep.subr.mxu0 0.0
  %730 = vmatpush1.msra.mxu0 0.0
  %731 = vmatprep.subr.mxu0 0.0
  %732 = vmatpush1.msra.mxu0 0.0
  %733 = vmatprep.subr.mxu0 0.0
  %734 = vmatpush1.msra.mxu0 0.0
  %735 = vmatprep.subr.mxu0 0.0
  %736 = vmatpush1.msra.mxu0 0.0
  %737 = vmatprep.subr.mxu0 0.0
  %738 = vmatpush1.msra.mxu0 0.0
  %739 = vmatprep.subr.mxu0 0.0
  %740 = vmatpush1.msra.mxu0 %v186
  %741 = vmatprep.subr.mxu0 0.0
  %742 = vmatpush1.msra.mxu0 %v185
  %743 = vmatprep.subr.mxu0 0.0
  %744 = vmatpush1.msra.mxu0 %v184
  %745 = vmatprep.subr.mxu0 0.0
  %746 = vmatpush1.msra.mxu0 %v183
  %747 = vmatprep.subr.mxu0 0.0
  %748 = vmatpush2.msra.mxu0 0.0
  %749 = vmatprep.subr.mxu0 0.0
  %750 = vmatpush2.msra.mxu0 0.0
  %751 = vmatprep.subr.mxu0 0.0
  %752 = vmatpush2.msra.mxu0 0.0
  %753 = vmatprep.subr.mxu0 0.0
  %754 = vmatpush2.msra.mxu0 0.0
  %755 = vmatprep.subr.mxu0 0.0
  %756 = vmatpush2.msra.mxu0 0.0
  %757 = vmatprep.subr.mxu0 0.0
  %758 = vmatpush2.msra.mxu0 0.0
  %759 = vmatprep.subr.mxu0 0.0
  %760 = vmatpush2.msra.mxu0 0.0
  %761 = vmatprep.subr.mxu0 0.0
  %762 = vmatpush2.msra.mxu0 0.0
  %763 = vmatprep.subr.mxu0 0.0
  %764 = vmatpush2.msra.mxu0 0.0
  %765 = vmatprep.subr.mxu0 0.0
  %766 = vmatpush2.msra.mxu0 0.0
  %767 = vmatprep.subr.mxu0 0.0
  %768 = vmatpush2.msra.mxu0 0.0
  %769 = vmatprep.subr.mxu0 0.0
  %770 = vmatpush2.msra.mxu0 0.0
  %771 = vmatprep.subr.mxu0 0.0
  %772 = vmatpush2.msra.mxu0 0.0
  %773 = vmatprep.subr.mxu0 0.0
  %774 = vmatpush2.msra.mxu0 0.0
  %775 = vmatprep.subr.mxu0 0.0
  %776 = vmatpush2.msra.mxu0 0.0
  %777 = vmatprep.subr.mxu0 0.0
  %778 = vmatpush2.msra.mxu0 0.0
  %779 = vmatprep.mubr.f32.mxu0 0.0
  %780 = vmatmul.mubr.f32.gmra.mxu0 %v713
  %v781 = vpop.f32.mrf.mxu0
  %v782 = vadd.f32 0.0, %v781
  %v783 = vpop.f32.mrf.mxu0
  %784 = vdwg.mxu0
  %v785 = vadd.f32 %v712, %v782
  %v786 = vxor.u32 %v785, 2147483648
  %v787 = vmul.f32 %v786, 1.442695
  %v788 = vpow.pop %v787
  %v789 = vadd.f32 %v788, 1.0
  %v790 = vrcp.pop %v789
  %v791 = vmul.f32 1.0, %v790
  %v792 = vtanh.pop %v785
  %v793 = vmul.f32 %v791, %v698
  %795 = vrot.lane.b32.xlu0 %v792, 64
  %v796 = vpop.permute.xlu0 %795
  %v798 = vmul.f32 %v791, %v796
  %800 = vrot.lane.b32.xlu0 %v798, 32
  %v801 = vpop.permute.xlu0 %800
  %v803 = vadd.f32 %v793, %v801
  %v804 = vtanh.pop %v803
  %806 = vrot.lane.b32.xlu0 %v804, 64
  %v807 = vpop.permute.xlu0 %806
  %v809 = vmul.f32 %v791, %v807
  %811 = vrot.lane.b32.xlu0 %v809, 32
  %v812 = vpop.permute.xlu0 %811
  %s814 = scalar_lea.vmem [#allocation3], 40
  %815 = vst.msk [vmem:[%s814] sm:$0xff] %vm45, %v812
  %s816 = scalar_lea.vmem [#allocation2], 48
  %v817 = vld [vmem:[%s816] sm:$0xff]
  %v818 = vsel %vm45, %v812, 0
  %820 = vmatprep.subr.mxu0 0.0
  %821 = vmatpush1.msra.mxu0 0.0
  %822 = vmatprep.subr.mxu0 0.0
  %823 = vmatpush1.msra.mxu0 0.0
  %824 = vmatprep.subr.mxu0 0.0
  %825 = vmatpush1.msra.mxu0 0.0
  %826 = vmatprep.subr.mxu0 0.0
  %827 = vmatpush1.msra.mxu0 0.0
  %828 = vmatprep.subr.mxu0 0.0
  %829 = vmatpush1.msra.mxu0 0.0
  %830 = vmatprep.subr.mxu0 0.0
  %831 = vmatpush1.msra.mxu0 0.0
  %832 = vmatprep.subr.mxu0 0.0
  %833 = vmatpush1.msra.mxu0 0.0
  %834 = vmatprep.subr.mxu0 0.0
  %835 = vmatpush1.msra.mxu0 0.0
  %836 = vmatprep.subr.mxu0 0.0
  %837 = vmatpush1.msra.mxu0 0.0
  %838 = vmatprep.subr.mxu0 0.0
  %839 = vmatpush1.msra.mxu0 0.0
  %840 = vmatprep.subr.mxu0 0.0
  %841 = vmatpush1.msra.mxu0 0.0
  %842 = vmatprep.subr.mxu0 0.0
  %843 = vmatpush1.msra.mxu0 0.0
  %844 = vmatprep.subr.mxu0 0.0
  %845 = vmatpush1.msra.mxu0 %v186
  %846 = vmatprep.subr.mxu0 0.0
  %847 = vmatpush1.msra.mxu0 %v185
  %848 = vmatprep.subr.mxu0 0.0
  %849 = vmatpush1.msra.mxu0 %v184
  %850 = vmatprep.subr.mxu0 0.0
  %851 = vmatpush1.msra.mxu0 %v183
  %852 = vmatprep.subr.mxu0 0.0
  %853 = vmatpush2.msra.mxu0 0.0
  %854 = vmatprep.subr.mxu0 0.0
  %855 = vmatpush2.msra.mxu0 0.0
  %856 = vmatprep.subr.mxu0 0.0
  %857 = vmatpush2.msra.mxu0 0.0
  %858 = vmatprep.subr.mxu0 0.0
  %859 = vmatpush2.msra.mxu0 0.0
  %860 = vmatprep.subr.mxu0 0.0
  %861 = vmatpush2.msra.mxu0 0.0
  %862 = vmatprep.subr.mxu0 0.0
  %863 = vmatpush2.msra.mxu0 0.0
  %864 = vmatprep.subr.mxu0 0.0
  %865 = vmatpush2.msra.mxu0 0.0
  %866 = vmatprep.subr.mxu0 0.0
  %867 = vmatpush2.msra.mxu0 0.0
  %868 = vmatprep.subr.mxu0 0.0
  %869 = vmatpush2.msra.mxu0 0.0
  %870 = vmatprep.subr.mxu0 0.0
  %871 = vmatpush2.msra.mxu0 0.0
  %872 = vmatprep.subr.mxu0 0.0
  %873 = vmatpush2.msra.mxu0 0.0
  %874 = vmatprep.subr.mxu0 0.0
  %875 = vmatpush2.msra.mxu0 0.0
  %876 = vmatprep.subr.mxu0 0.0
  %877 = vmatpush2.msra.mxu0 0.0
  %878 = vmatprep.subr.mxu0 0.0
  %879 = vmatpush2.msra.mxu0 0.0
  %880 = vmatprep.subr.mxu0 0.0
  %881 = vmatpush2.msra.mxu0 0.0
  %882 = vmatprep.subr.mxu0 0.0
  %883 = vmatpush2.msra.mxu0 0.0
  %884 = vmatprep.mubr.f32.mxu0 0.0
  %885 = vmatmul.mubr.f32.gmra.mxu0 %v818
  %v886 = vpop.f32.mrf.mxu0
  %v887 = vadd.f32 0.0, %v886
  %v888 = vpop.f32.mrf.mxu0
  %889 = vdwg.mxu0
  %v890 = vadd.f32 %v817, %v887
  %v891 = vxor.u32 %v890, 2147483648
  %v892 = vmul.f32 %v891, 1.442695
  %v893 = vpow.pop %v892
  %v894 = vadd.f32 %v893, 1.0
  %v895 = vrcp.pop %v894
  %v896 = vmul.f32 1.0, %v895
  %v897 = vtanh.pop %v890
  %v898 = vmul.f32 %v896, %v803
  %900 = vrot.lane.b32.xlu0 %v897, 64
  %v901 = vpop.permute.xlu0 %900
  %v903 = vmul.f32 %v896, %v901
  %905 = vrot.lane.b32.xlu0 %v903, 32
  %v906 = vpop.permute.xlu0 %905
  %v908 = vadd.f32 %v898, %v906
  %v909 = vtanh.pop %v908
  %911 = vrot.lane.b32.xlu0 %v909, 64
  %v912 = vpop.permute.xlu0 %911
  %v914 = vmul.f32 %v896, %v912
  %916 = vrot.lane.b32.xlu0 %v914, 32
  %v917 = vpop.permute.xlu0 %916
  %s919 = scalar_lea.vmem [#allocation3], 48
  %920 = vst.msk [vmem:[%s919] sm:$0xff] %vm45, %v917
  %s921 = scalar_lea.vmem [#allocation2], 56
  %v922 = vld [vmem:[%s921] sm:$0xff]
  %v923 = vsel %vm45, %v917, 0
  %925 = vmatprep.subr.mxu0 0.0
  %926 = vmatpush1.msra.mxu0 0.0
  %927 = vmatprep.subr.mxu0 0.0
  %928 = vmatpush1.msra.mxu0 0.0
  %929 = vmatprep.subr.mxu0 0.0
  %930 = vmatpush1.msra.mxu0 0.0
  %931 = vmatprep.subr.mxu0 0.0
  %932 = vmatpush1.msra.mxu0 0.0
  %933 = vmatprep.subr.mxu0 0.0
  %934 = vmatpush1.msra.mxu0 0.0
  %935 = vmatprep.subr.mxu0 0.0
  %936 = vmatpush1.msra.mxu0 0.0
  %937 = vmatprep.subr.mxu0 0.0
  %938 = vmatpush1.msra.mxu0 0.0
  %939 = vmatprep.subr.mxu0 0.0
  %940 = vmatpush1.msra.mxu0 0.0
  %941 = vmatprep.subr.mxu0 0.0
  %942 = vmatpush1.msra.mxu0 0.0
  %943 = vmatprep.subr.mxu0 0.0
  %944 = vmatpush1.msra.mxu0 0.0
  %945 = vmatprep.subr.mxu0 0.0
  %946 = vmatpush1.msra.mxu0 0.0
  %947 = vmatprep.subr.mxu0 0.0
  %948 = vmatpush1.msra.mxu0 0.0
  %949 = vmatprep.subr.mxu0 0.0
  %950 = vmatpush1.msra.mxu0 %v186
  %951 = vmatprep.subr.mxu0 0.0
  %952 = vmatpush1.msra.mxu0 %v185
  %953 = vmatprep.subr.mxu0 0.0
  %954 = vmatpush1.msra.mxu0 %v184
  %955 = vmatprep.subr.mxu0 0.0
  %956 = vmatpush1.msra.mxu0 %v183
  %957 = vmatprep.subr.mxu0 0.0
  %958 = vmatpush2.msra.mxu0 0.0
  %959 = vmatprep.subr.mxu0 0.0
  %960 = vmatpush2.msra.mxu0 0.0
  %961 = vmatprep.subr.mxu0 0.0
  %962 = vmatpush2.msra.mxu0 0.0
  %963 = vmatprep.subr.mxu0 0.0
  %964 = vmatpush2.msra.mxu0 0.0
  %965 = vmatprep.subr.mxu0 0.0
  %966 = vmatpush2.msra.mxu0 0.0
  %967 = vmatprep.subr.mxu0 0.0
  %968 = vmatpush2.msra.mxu0 0.0
  %969 = vmatprep.subr.mxu0 0.0
  %970 = vmatpush2.msra.mxu0 0.0
  %971 = vmatprep.subr.mxu0 0.0
  %972 = vmatpush2.msra.mxu0 0.0
  %973 = vmatprep.subr.mxu0 0.0
  %974 = vmatpush2.msra.mxu0 0.0
  %975 = vmatprep.subr.mxu0 0.0
  %976 = vmatpush2.msra.mxu0 0.0
  %977 = vmatprep.subr.mxu0 0.0
  %978 = vmatpush2.msra.mxu0 0.0
  %979 = vmatprep.subr.mxu0 0.0
  %980 = vmatpush2.msra.mxu0 0.0
  %981 = vmatprep.subr.mxu0 0.0
  %982 = vmatpush2.msra.mxu0 0.0
  %983 = vmatprep.subr.mxu0 0.0
  %984 = vmatpush2.msra.mxu0 0.0
  %985 = vmatprep.subr.mxu0 0.0
  %986 = vmatpush2.msra.mxu0 0.0
  %987 = vmatprep.subr.mxu0 0.0
  %988 = vmatpush2.msra.mxu0 0.0
  %989 = vmatprep.mubr.f32.mxu0 0.0
  %990 = vmatmul.mubr.f32.gmra.mxu0 %v923
  %v991 = vpop.f32.mrf.mxu0
  %v992 = vadd.f32 0.0, %v991
  %v993 = vpop.f32.mrf.mxu0
  %994 = vdwg.mxu0
  %v995 = vadd.f32 %v922, %v992
  %v996 = vxor.u32 %v995, 2147483648
  %v997 = vmul.f32 %v996, 1.442695
  %v998 = vpow.pop %v997
  %v999 = vadd.f32 %v998, 1.0
  %v1000 = vrcp.pop %v999
  %v1001 = vmul.f32 1.0, %v1000
  %v1002 = vtanh.pop %v995
  %v1003 = vmul.f32 %v1001, %v908
  %1005 = vrot.lane.b32.xlu0 %v1002, 64
  %v1006 = vpop.permute.xlu0 %1005
  %v1008 = vmul.f32 %v1001, %v1006
  %1010 = vrot.lane.b32.xlu0 %v1008, 32
  %v1011 = vpop.permute.xlu0 %1010
  %v1013 = vadd.f32 %v1003, %v1011
  %v1014 = vtanh.pop %v1013
  %1016 = vrot.lane.b32.xlu0 %v1014, 64
  %v1017 = vpop.permute.xlu0 %1016
  %v1019 = vmul.f32 %v1001, %v1017
  %1021 = vrot.lane.b32.xlu0 %v1019, 32
  %v1022 = vpop.permute.xlu0 %1021
  %s1024 = scalar_lea.vmem [#allocation3], 56
  %1025 = vst.msk [vmem:[%s1024] sm:$0xff] %vm45, %v1022
  %v1026 = vld [vmem:[#allocation3] sm:$0xff]
  %v1027 = vld [vmem:[#allocation3 + $0x8] sm:$0xff]
  %v1028 = vld [vmem:[#allocation3 + $0x10] sm:$0xff]
  %v1029 = vld [vmem:[#allocation3 + $0x18] sm:$0xff]
  %v1030 = vld [vmem:[#allocation3 + $0x20] sm:$0xff]
  %v1031 = vld [vmem:[#allocation3 + $0x28] sm:$0xff]
  %v1032 = vld [vmem:[#allocation3 + $0x30] sm:$0xff]
  %v1033 = vld [vmem:[#allocation3 + $0x38] sm:$0xff]
  %v1034 = vld [vmem:[%s1] sm:$0xff]
  %v1035 = vld [vmem:[%s1 + $0x8] sm:$0xff]
  %v1036 = vld [vmem:[%s1 + $0x10] sm:$0xff]
  %v1037 = vld [vmem:[%s1 + $0x18] sm:$0xff]
  %v1038 = vld [vmem:[%s1 + $0x20] sm:$0xff]
  %v1039 = vld [vmem:[%s1 + $0x28] sm:$0xff]
  %v1040 = vld [vmem:[%s1 + $0x30] sm:$0xff]
  %v1041 = vld [vmem:[%s1 + $0x38] sm:$0xff]
  %1043 = vset.pattern.permute.xlu0 0
  %1044 = vperm.xlu0 %1043, %v1034
  %v1045 = vpop.permute.xlu0 %1044
  %1048 = vset.pattern.permute.xlu0 0
  %1049 = vperm.xlu0 %1048, %v1035
  %v1050 = vpop.permute.xlu0 %1049
  %1053 = vset.pattern.permute.xlu0 0
  %1054 = vperm.xlu0 %1053, %v1036
  %v1055 = vpop.permute.xlu0 %1054
  %1058 = vset.pattern.permute.xlu0 0
  %1059 = vperm.xlu0 %1058, %v1037
  %v1060 = vpop.permute.xlu0 %1059
  %1063 = vset.pattern.permute.xlu0 0
  %1064 = vperm.xlu0 %1063, %v1038
  %v1065 = vpop.permute.xlu0 %1064
  %1068 = vset.pattern.permute.xlu0 0
  %1069 = vperm.xlu0 %1068, %v1039
  %v1070 = vpop.permute.xlu0 %1069
  %1073 = vset.pattern.permute.xlu0 0
  %1074 = vperm.xlu0 %1073, %v1040
  %v1075 = vpop.permute.xlu0 %1074
  %1078 = vset.pattern.permute.xlu0 0
  %1079 = vperm.xlu0 %1078, %v1041
  %v1080 = vpop.permute.xlu0 %1079
  %v1082 = vmul.f32 %v1026, %v1045
  %v1083 = vmul.f32 %v1027, %v1050
  %v1084 = vmul.f32 %v1028, %v1055
  %v1085 = vmul.f32 %v1029, %v1060
  %v1086 = vmul.f32 %v1030, %v1065
  %v1087 = vmul.f32 %v1031, %v1070
  %v1088 = vmul.f32 %v1032, %v1075
  %v1089 = vmul.f32 %v1033, %v1080
  %v1090 = vld [vmem:[%s5] sm:$0xff]
  %v1091 = vld [vmem:[%s5 + $0x8] sm:$0xff]
  %v1092 = vld [vmem:[%s5 + $0x10] sm:$0xff]
  %v1093 = vld [vmem:[%s5 + $0x18] sm:$0xff]
  %v1094 = vld [vmem:[%s6] sm:$0x1]
  %v1096 = vlaneseq
  %v1097 = vshrl.u32 %v1096, 7
  %v1098 = vsub.s32 0, %v1097
  %v1099 = vrot.slane %v1094, %v1098
  %v1102 = vsel %vm45, %v1082, 0
  %v1105 = vsel %vm45, %v1083, 0
  %v1108 = vsel %vm45, %v1084, 0
  %v1111 = vsel %vm45, %v1085, 0
  %v1114 = vsel %vm45, %v1086, 0
  %v1117 = vsel %vm45, %v1087, 0
  %v1120 = vsel %vm45, %v1088, 0
  %v1123 = vsel %vm45, %v1089, 0
  %1125 = vmatprep.subr.mxu0 0.0
  %1126 = vmatpush1.msra.mxu0 0.0
  %1127 = vmatprep.subr.mxu0 0.0
  %1128 = vmatpush1.msra.mxu0 0.0
  %1129 = vmatprep.subr.mxu0 0.0
  %1130 = vmatpush1.msra.mxu0 0.0
  %1131 = vmatprep.subr.mxu0 0.0
  %1132 = vmatpush1.msra.mxu0 0.0
  %1133 = vmatprep.subr.mxu0 0.0
  %1134 = vmatpush1.msra.mxu0 0.0
  %1135 = vmatprep.subr.mxu0 0.0
  %1136 = vmatpush1.msra.mxu0 0.0
  %1137 = vmatprep.subr.mxu0 0.0
  %1138 = vmatpush1.msra.mxu0 0.0
  %1139 = vmatprep.subr.mxu0 0.0
  %1140 = vmatpush1.msra.mxu0 0.0
  %1141 = vmatprep.subr.mxu0 0.0
  %1142 = vmatpush1.msra.mxu0 0.0
  %1143 = vmatprep.subr.mxu0 0.0
  %1144 = vmatpush1.msra.mxu0 0.0
  %1145 = vmatprep.subr.mxu0 0.0
  %1146 = vmatpush1.msra.mxu0 0.0
  %1147 = vmatprep.subr.mxu0 0.0
  %1148 = vmatpush1.msra.mxu0 0.0
  %1149 = vmatprep.subr.mxu0 0.0
  %1150 = vmatpush1.msra.mxu0 %v1093
  %1151 = vmatprep.subr.mxu0 0.0
  %1152 = vmatpush1.msra.mxu0 %v1092
  %1153 = vmatprep.subr.mxu0 0.0
  %1154 = vmatpush1.msra.mxu0 %v1091
  %1155 = vmatprep.subr.mxu0 0.0
  %1156 = vmatpush1.msra.mxu0 %v1090
  %1157 = vmatprep.subr.mxu0 0.0
  %1158 = vmatpush2.msra.mxu0 0.0
  %1159 = vmatprep.subr.mxu0 0.0
  %1160 = vmatpush2.msra.mxu0 0.0
  %1161 = vmatprep.subr.mxu0 0.0
  %1162 = vmatpush2.msra.mxu0 0.0
  %1163 = vmatprep.subr.mxu0 0.0
  %1164 = vmatpush2.msra.mxu0 0.0
  %1165 = vmatprep.subr.mxu0 0.0
  %1166 = vmatpush2.msra.mxu0 0.0
  %1167 = vmatprep.subr.mxu0 0.0
  %1168 = vmatpush2.msra.mxu0 0.0
  %1169 = vmatprep.subr.mxu0 0.0
  %1170 = vmatpush2.msra.mxu0 0.0
  %1171 = vmatprep.subr.mxu0 0.0
  %1172 = vmatpush2.msra.mxu0 0.0
  %1173 = vmatprep.subr.mxu0 0.0
  %1174 = vmatpush2.msra.mxu0 0.0
  %1175 = vmatprep.subr.mxu0 0.0
  %1176 = vmatpush2.msra.mxu0 0.0
  %1177 = vmatprep.subr.mxu0 0.0
  %1178 = vmatpush2.msra.mxu0 0.0
  %1179 = vmatprep.subr.mxu0 0.0
  %1180 = vmatpush2.msra.mxu0 0.0
  %1181 = vmatprep.subr.mxu0 0.0
  %1182 = vmatpush2.msra.mxu0 0.0
  %1183 = vmatprep.subr.mxu0 0.0
  %1184 = vmatpush2.msra.mxu0 0.0
  %1185 = vmatprep.subr.mxu0 0.0
  %1186 = vmatpush2.msra.mxu0 0.0
  %1187 = vmatprep.subr.mxu0 0.0
  %1188 = vmatpush2.msra.mxu0 0.0
  %1189 = vmatprep.mubr.f32.mxu0 0.0
  %1190 = vmatmul.mubr.f32.gmra.mxu0 %v1102
  %v1191 = vpop.f32.mrf.mxu0
  %v1192 = vadd.f32 %v1099, %v1191
  %v1193 = vpop.f32.mrf.mxu0
  %1194 = vmatprep.mubr.f32.mxu0 0.0
  %1195 = vmatmul.mubr.f32.gmra.mxu0 %v1105
  %v1196 = vpop.f32.mrf.mxu0
  %v1197 = vadd.f32 %v1099, %v1196
  %v1198 = vpop.f32.mrf.mxu0
  %1199 = vmatprep.mubr.f32.mxu0 0.0
  %1200 = vmatmul.mubr.f32.gmra.mxu0 %v1108
  %v1201 = vpop.f32.mrf.mxu0
  %v1202 = vadd.f32 %v1099, %v1201
  %v1203 = vpop.f32.mrf.mxu0
  %1204 = vmatprep.mubr.f32.mxu0 0.0
  %1205 = vmatmul.mubr.f32.gmra.mxu0 %v1111
  %v1206 = vpop.f32.mrf.mxu0
  %v1207 = vadd.f32 %v1099, %v1206
  %v1208 = vpop.f32.mrf.mxu0
  %1209 = vmatprep.mubr.f32.mxu0 0.0
  %1210 = vmatmul.mubr.f32.gmra.mxu0 %v1114
  %v1211 = vpop.f32.mrf.mxu0
  %v1212 = vadd.f32 %v1099, %v1211
  %v1213 = vpop.f32.mrf.mxu0
  %1214 = vmatprep.mubr.f32.mxu0 0.0
  %1215 = vmatmul.mubr.f32.gmra.mxu0 %v1117
  %v1216 = vpop.f32.mrf.mxu0
  %v1217 = vadd.f32 %v1099, %v1216
  %v1218 = vpop.f32.mrf.mxu0
  %1219 = vmatprep.mubr.f32.mxu0 0.0
  %1220 = vmatmul.mubr.f32.gmra.mxu0 %v1120
  %v1221 = vpop.f32.mrf.mxu0
  %v1222 = vadd.f32 %v1099, %v1221
  %v1223 = vpop.f32.mrf.mxu0
  %1224 = vmatprep.mubr.f32.mxu0 0.0
  %1225 = vmatmul.mubr.f32.gmra.mxu0 %v1123
  %v1226 = vpop.f32.mrf.mxu0
  %v1227 = vadd.f32 %v1099, %v1226
  %v1228 = vpop.f32.mrf.mxu0
  %1229 = vdwg.mxu0
  %1230 = vst.msk [vmem:[%s7] sm:$0xff] %vm45, %v1192
  %1231 = vst.msk [vmem:[%s7 + $0x8] sm:$0xff] %vm45, %v1197
  %1232 = vst.msk [vmem:[%s7 + $0x10] sm:$0xff] %vm45, %v1202
  %1233 = vst.msk [vmem:[%s7 + $0x18] sm:$0xff] %vm45, %v1207
  %1234 = vst.msk [vmem:[%s7 + $0x20] sm:$0xff] %vm45, %v1212
  %1235 = vst.msk [vmem:[%s7 + $0x28] sm:$0xff] %vm45, %v1217
  %1236 = vst.msk [vmem:[%s7 + $0x30] sm:$0xff] %vm45, %v1222
  %1237 = vst.msk [vmem:[%s7 + $0x38] sm:$0xff] %vm45, %v1227
  // Predicated region
  $region30: #{rnn_layers_pallas.1} parent=0 // pred_check
    _
  $region31: #{rnn_layers_pallas.1} parent=0 // pred_check_branch
    %1239 = sbr.rel (0) target = $region33
  $region32: #{rnn_layers_pallas.1} parent=0 // pred_region
    _
  $region33: #{rnn_layers_pallas.1} parent=0 // pred_fallthru
    _
  // Predicated region
  $region34: #{rnn_layers_pallas.1} parent=0 // pred_check
    _
  $region35: #{rnn_layers_pallas.1} parent=0 // pred_check_branch
    %1241 = sbr.rel (0) target = $region37
  $region36: #{rnn_layers_pallas.1} parent=0 // pred_region
    _
  $region37: #{rnn_layers_pallas.1} parent=0 // pred_fallthru
    _

</llo_original>
